<compile_context>
chip_gen: v7x
topology: tpu7x:2x2x1
jax: 0.10.0
libtpu: 0.0.40
codegen_flags: <defaults>
</compile_context>

<pallas_src>
import functools
import numpy as np

import jax
import jax.numpy as jnp
from jax.experimental import pallas as pl
from jax.experimental.pallas import tpu as pltpu


# --------------------------------------------------------------------------
# Pallas kernel: (M,K)@(K,N) + bias (+ relu); bf16 operands, f32 accumulate
# --------------------------------------------------------------------------
def _mm_kernel(x_ref, w_ref, b_ref, o_ref, *, act):
    acc = jnp.dot(x_ref[...], w_ref[...], preferred_element_type=jnp.float32)
    acc = acc + b_ref[...]
    if act == "relu":
        acc = jnp.maximum(acc, 0.0)
    o_ref[...] = acc.astype(o_ref.dtype)


def _pick_tm(M, tm_max):
    """Large M tile; prefer an exact divisor (multiple of 16) so boundary
    blocks are full and the grid has >= 2 steps for megacore sharding."""
    if M <= tm_max:
        return M
    for tm in range(tm_max, tm_max // 2 - 1, -16):
        if M % tm == 0:
            return tm
    return tm_max   # ragged last block: Pallas masks OOB reads / writes


def pallas_linear(x, w, b=None, act=None, out_dtype=jnp.float32, tm_max=1024):
    """x: (M,K) @ w: (K,N) + b, optional fused relu. Tiles M only."""
    M, K = x.shape
    N = w.shape[1]
    if b is None:
        b = jnp.zeros((N,), jnp.float32)
    b2 = jnp.asarray(b, jnp.float32).reshape(1, N)
    xb = x.astype(jnp.bfloat16)            # bf16 MXU operands, halves DMA bytes
    wb = w.astype(jnp.bfloat16)
    tm = _pick_tm(M, tm_max)
    return pl.pallas_call(
        functools.partial(_mm_kernel, act=act),
        out_shape=jax.ShapeDtypeStruct((M, N), out_dtype),
        grid=(pl.cdiv(M, tm),),
        in_specs=[
            pl.BlockSpec((tm, K), lambda i: (i, 0)),
            pl.BlockSpec((K, N), lambda i: (0, 0)),
            pl.BlockSpec((1, N), lambda i: (0, 0)),
        ],
        out_specs=pl.BlockSpec((tm, N), lambda i: (i, 0)),
        compiler_params=pltpu.CompilerParams(
            dimension_semantics=("parallel",)),
    )(xb, wb, b2)


# --------------------------------------------------------------------------
# Conv glue: im2col (XLA) -> Pallas matmul
# --------------------------------------------------------------------------
def _im2col(x_nhwc, kh, kw, stride):
    N, H, W, C = x_nhwc.shape
    Ho = (H - kh) // stride + 1
    Wo = (W - kw) // stride + 1
    cols = []
    for i in range(kh):
        for j in range(kw):
            cols.append(x_nhwc[:, i:i + (Ho - 1) * stride + 1:stride,
                               j:j + (Wo - 1) * stride + 1:stride, :])
    cols = jnp.concatenate(cols, axis=-1)            # (N,Ho,Wo,kh*kw*C)
    return cols.reshape(N * Ho * Wo, kh * kw * C), Ho, Wo


def conv2d_nhwc(x, w_oihw, b=None, stride=1, act=None, out_dtype=jnp.float32):
    """x: (N,H,W,Cin) NHWC, w: PyTorch (Cout,Cin,kh,kw), VALID padding."""
    Cout, Cin, kh, kw = w_oihw.shape
    cols, Ho, Wo = _im2col(x, kh, kw, stride)
    wmat = jnp.transpose(w_oihw, (2, 3, 1, 0)).reshape(kh * kw * Cin, Cout)
    y = pallas_linear(cols, wmat, b, act=act, out_dtype=out_dtype)
    return y.reshape(x.shape[0], Ho, Wo, Cout)


# --------------------------------------------------------------------------
# build_grid (same as the PyTorch helper)
# --------------------------------------------------------------------------
def build_grid_np(resolution):
    ranges = [np.linspace(0.0, 1.0, num=r) for r in resolution]
    grid = np.meshgrid(*ranges, sparse=False, indexing="ij")
    grid = np.stack(grid, axis=-1).reshape(resolution[0], resolution[1], -1)
    grid = grid[None].astype(np.float32)
    return jnp.asarray(np.concatenate([grid, 1.0 - grid], axis=-1))  # (1,r0,r1,4)


# --------------------------------------------------------------------------
# ImageEncoder forward
# --------------------------------------------------------------------------
def image_encoder(x_nchw, p, cfg):
    patch = cfg["patch_size"]
    d = cfg["last_channel"]
    b, c, H, W = x_nchw.shape
    pH, pW = H // patch, W // patch

    # unfold(2,16,16).unfold(3,16,16).permute(...)  ->  NHWC patches
    x = x_nchw.reshape(b, c, pH, patch, pW, patch)
    x = jnp.transpose(x, (0, 2, 4, 3, 5, 1)).reshape(b * pH * pW, patch, patch, c)
    x = x.astype(jnp.bfloat16)

    # conv1 (3x3) + relu, conv2 (5x5, stride 2) + relu  — bf16 intermediates
    x = conv2d_nhwc(x, p["conv1_w"], None, stride=1, act="relu",
                    out_dtype=jnp.bfloat16)
    x = conv2d_nhwc(x, p["conv2_w"], None, stride=2, act="relu",
                    out_dtype=jnp.bfloat16)

    # conv3 (5x5 over its whole 5x5 input -> a matmul) fused with the
    # softPosEmbbeding Linear: [cols3 | grid_feats] @ [[W3],[W_pos]] + b_pos
    P = x.shape[0]
    cols3 = x.reshape(P, -1)                                  # (P, 5*5*C2)
    w3_mat = jnp.transpose(p["conv3_w"], (2, 3, 1, 0)).reshape(-1, d)
    grid = p["grid"]                                          # (1,pH,pW,4)
    gridf = jnp.broadcast_to(grid, (b,) + grid.shape[1:]).reshape(P, 4)
    inp = jnp.concatenate([cols3, gridf.astype(cols3.dtype)], axis=-1)
    wcat = jnp.concatenate([w3_mat, p["pos_w"]], axis=0)      # (800+4, d)
    out = pallas_linear(inp, wcat, p["pos_b"], out_dtype=jnp.float32)
    return out.reshape(b, pH, pW, d)


# --------------------------------------------------------------------------
# Pure-JAX f32 reference (for validation of the Pallas path)
# --------------------------------------------------------------------------
def reference_image_encoder(x_nchw, p, cfg):
    patch = cfg["patch_size"]
    d = cfg["last_channel"]
    b, c, H, W = x_nchw.shape
    pH, pW = H // patch, W // patch
    xp = x_nchw.reshape(b, c, pH, patch, pW, patch)
    xp = jnp.transpose(xp, (0, 2, 4, 1, 3, 5)).reshape(b * pH * pW, c, patch, patch)
    dn = ("NCHW", "OIHW", "NCHW")
    h = jax.lax.conv_general_dilated(xp, p["conv1_w"], (1, 1), "VALID",
                                     dimension_numbers=dn)
    h = jax.nn.relu(h)
    h = jax.lax.conv_general_dilated(h, p["conv2_w"], (2, 2), "VALID",
                                     dimension_numbers=dn)
    h = jax.nn.relu(h)
    h = jax.lax.conv_general_dilated(h, p["conv3_w"], (1, 1), "VALID",
                                     dimension_numbers=dn)
    h = h.reshape(b, pH, pW, d)
    pos = jnp.matmul(p["grid"], p["pos_w"]) + p["pos_b"]      # (1,pH,pW,d)
    return h + pos


# --------------------------------------------------------------------------
# Deterministic parameter construction (shapes from ImageEncoder.__init__)
# --------------------------------------------------------------------------
def init_params(key, cfg):
    d = cfg["last_channel"]
    pH = cfg["resolution"][0] // cfg["patch_size"]
    pW = cfg["resolution"][1] // cfg["patch_size"]
    ks = iter(jax.random.split(key, 8))

    def W(*shape, s=0.1):
        return (s * jax.random.normal(next(ks), shape)).astype(jnp.float32)

    return dict(
        conv1_w=W(d // 4, 3, 3, 3),          # Conv2d(3, d/4, 3, bias=False)
        conv2_w=W(d // 2, d // 4, 5, 5),     # Conv2d(d/4, d/2, 5, s=2, bias=False)
        conv3_w=W(d, d // 2, 5, 5),          # Conv2d(d/2, d, 5, bias=False)
        pos_w=W(4, d), pos_b=W(d),           # Linear(4, d)
        grid=build_grid_np((pH, pW)),
    )


# --------------------------------------------------------------------------
if __name__ == "__main__":
    cfg = dict(patch_size=16, last_channel=64, resolution=(32, 32))
    key = jax.random.PRNGKey(0)
    kx, kp = jax.random.split(key)
    x = jax.random.normal(
        kx, (2, 3, cfg["resolution"][0], cfg["resolution"][1]), jnp.float32)
    params = init_params(kp, cfg)

    fwd = jax.jit(functools.partial(image_encoder, cfg=cfg))
    out = fwd(x, params)
    jax.block_until_ready(out)

    pH = cfg["resolution"][0] // cfg["patch_size"]
    pW = cfg["resolution"][1] // cfg["patch_size"]
    assert out.shape == (2, pH, pW, cfg["last_channel"]), out.shape
    assert bool(jnp.all(jnp.isfinite(out)))

    # validate against the f32 XLA reference (bf16 MXU operands -> small drift)
    ref = reference_image_encoder(x, params, cfg)
    max_diff = float(jnp.max(jnp.abs(out - ref)))
    assert max_diff < 0.15, f"max diff vs f32 reference too large: {max_diff}"

    print("KERNEL_OK")
</pallas_src>

<mosaic_0001>
module attributes {stable_mosaic.version = 11 : i64} {
  func.func @_mm_kernel(%arg0: i32, %arg1: memref<784x27xbf16, #tpu.memory_space<vmem>>, %arg2: memref<27x16xbf16, #tpu.memory_space<vmem>>, %arg3: memref<1x16xf32, #tpu.memory_space<vmem>>, %arg4: memref<784x16xbf16, #tpu.memory_space<vmem>>) attributes {dimension_semantics = [#tpu.dimension_semantics<parallel>], iteration_bounds = array<i64: 2>, scalar_prefetch = 0 : i64, scratch_operands = 0 : i64, tpu.core_type = #tpu.core_type<tc>, window_params = [{transform_indices = @transform_0, window_bounds = array<i64: 784, 27>}, {pipeline_mode = #tpu.pipeline_mode<synchronous>, transform_indices = @transform_1, window_bounds = array<i64: 27, 16>}, {pipeline_mode = #tpu.pipeline_mode<synchronous>, transform_indices = @transform_2, window_bounds = array<i64: 1, 16>}, {transform_indices = @transform_3, window_bounds = array<i64: 784, 16>}]} {
    %c0 = arith.constant 0 : index
    %c0_0 = arith.constant 0 : index
    %0 = vector.load %arg1[%c0, %c0_0] : memref<784x27xbf16, #tpu.memory_space<vmem>>, vector<784x27xbf16>
    %c0_1 = arith.constant 0 : index
    %c0_2 = arith.constant 0 : index
    %1 = vector.load %arg2[%c0_1, %c0_2] : memref<27x16xbf16, #tpu.memory_space<vmem>>, vector<27x16xbf16>
    %cst = arith.constant dense<0.000000e+00> : vector<784x16xf32>
    %2 = tpu.matmul %0, %1, %cst {dimension_numbers = #tpu.dot_dimension_numbers<[1], [0], [0], [1], [0, 0, 1, 1], [], []>} : vector<784x27xbf16>, vector<27x16xbf16>, vector<784x16xf32> -> vector<784x16xf32>
    %c0_3 = arith.constant 0 : index
    %c0_4 = arith.constant 0 : index
    %3 = vector.load %arg3[%c0_3, %c0_4] : memref<1x16xf32, #tpu.memory_space<vmem>>, vector<1x16xf32>
    %4 = vector.broadcast %3 : vector<1x16xf32> to vector<784x16xf32>
    %5 = arith.addf %2, %4 : vector<784x16xf32>
    %cst_5 = arith.constant 0.000000e+00 : f32
    %6 = vector.broadcast %cst_5 : f32 to vector<784x16xf32>
    %7 = arith.maximumf %5, %6 : vector<784x16xf32>
    %8 = arith.truncf %7 : vector<784x16xf32> to vector<784x16xbf16>
    %c0_6 = arith.constant 0 : index
    %c0_7 = arith.constant 0 : index
    %9 = vector.load %arg4[%c0_6, %c0_7] : memref<784x16xbf16, #tpu.memory_space<vmem>>, vector<784x16xbf16>
    tpu.vector_store %arg4[%c0_6, %c0_7], %8 {strides = array<i32>} : memref<784x16xbf16, #tpu.memory_space<vmem>>, vector<784x16xbf16>,
    return
  }
  func.func @transform_0(%arg0: i32) -> (i32, i32) {
    %c0_i32 = arith.constant 0 : i32
    %c0_i32_0 = arith.constant 0 : i32
    return %arg0, %c0_i32 : i32, i32
  }
  func.func @transform_1(%arg0: i32) -> (i32, i32) {
    %c0_i32 = arith.constant 0 : i32
    %c0_i32_0 = arith.constant 0 : i32
    %c0_i32_1 = arith.constant 0 : i32
    return %c0_i32, %c0_i32_0 : i32, i32
  }
  func.func @transform_2(%arg0: i32) -> (i32, i32) {
    %c0_i32 = arith.constant 0 : i32
    %c0_i32_0 = arith.constant 0 : i32
    %c0_i32_1 = arith.constant 0 : i32
    return %c0_i32, %c0_i32_0 : i32, i32
  }
  func.func @transform_3(%arg0: i32) -> (i32, i32) {
    %c0_i32 = arith.constant 0 : i32
    %c0_i32_0 = arith.constant 0 : i32
    return %arg0, %c0_i32 : i32, i32
  }
}

module attributes {stable_mosaic.version = 11 : i64} {
  func.func @_mm_kernel(%arg0: i32, %arg1: memref<200x400xbf16, #tpu.memory_space<vmem>>, %arg2: memref<400x32xbf16, #tpu.memory_space<vmem>>, %arg3: memref<1x32xf32, #tpu.memory_space<vmem>>, %arg4: memref<200x32xbf16, #tpu.memory_space<vmem>>) attributes {dimension_semantics = [#tpu.dimension_semantics<parallel>], iteration_bounds = array<i64: 1>, scalar_prefetch = 0 : i64, scratch_operands = 0 : i64, tpu.core_type = #tpu.core_type<tc>, window_params = [{transform_indices = @transform_0, window_bounds = array<i64: 200, 400>}, {pipeline_mode = #tpu.pipeline_mode<synchronous>, transform_indices = @transform_1, window_bounds = array<i64: 400, 32>}, {pipeline_mode = #tpu.pipeline_mode<synchronous>, transform_indices = @transform_2, window_bounds = array<i64: 1, 32>}, {transform_indices = @transform_3, window_bounds = array<i64: 200, 32>}]} {
    %c0 = arith.constant 0 : index
    %c0_0 = arith.constant 0 : index
    %0 = vector.load %arg1[%c0, %c0_0] : memref<200x400xbf16, #tpu.memory_space<vmem>>, vector<200x400xbf16>
    %c0_1 = arith.constant 0 : index
    %c0_2 = arith.constant 0 : index
    %1 = vector.load %arg2[%c0_1, %c0_2] : memref<400x32xbf16, #tpu.memory_space<vmem>>, vector<400x32xbf16>
    %cst = arith.constant dense<0.000000e+00> : vector<200x32xf32>
    %2 = tpu.matmul %0, %1, %cst {dimension_numbers = #tpu.dot_dimension_numbers<[1], [0], [0], [1], [0, 0, 1, 1], [], []>} : vector<200x400xbf16>, vector<400x32xbf16>, vector<200x32xf32> -> vector<200x32xf32>
    %c0_3 = arith.constant 0 : index
    %c0_4 = arith.constant 0 : index
    %3 = vector.load %arg3[%c0_3, %c0_4] : memref<1x32xf32, #tpu.memory_space<vmem>>, vector<1x32xf32>
    %4 = vector.broadcast %3 : vector<1x32xf32> to vector<200x32xf32>
    %5 = arith.addf %2, %4 : vector<200x32xf32>
    %cst_5 = arith.constant 0.000000e+00 : f32
    %6 = vector.broadcast %cst_5 : f32 to vector<200x32xf32>
    %7 = arith.maximumf %5, %6 : vector<200x32xf32>
    %8 = arith.truncf %7 : vector<200x32xf32> to vector<200x32xbf16>
    %c0_6 = arith.constant 0 : index
    %c0_7 = arith.constant 0 : index
    %9 = vector.load %arg4[%c0_6, %c0_7] : memref<200x32xbf16, #tpu.memory_space<vmem>>, vector<200x32xbf16>
    tpu.vector_store %arg4[%c0_6, %c0_7], %8 {strides = array<i32>} : memref<200x32xbf16, #tpu.memory_space<vmem>>, vector<200x32xbf16>,
    return
  }
  func.func @transform_0(%arg0: i32) -> (i32, i32) {
    %c0_i32 = arith.constant 0 : i32
    %c0_i32_0 = arith.constant 0 : i32
    return %arg0, %c0_i32 : i32, i32
  }
  func.func @transform_1(%arg0: i32) -> (i32, i32) {
    %c0_i32 = arith.constant 0 : i32
    %c0_i32_0 = arith.constant 0 : i32
    %c0_i32_1 = arith.constant 0 : i32
    return %c0_i32, %c0_i32_0 : i32, i32
  }
  func.func @transform_2(%arg0: i32) -> (i32, i32) {
    %c0_i32 = arith.constant 0 : i32
    %c0_i32_0 = arith.constant 0 : i32
    %c0_i32_1 = arith.constant 0 : i32
    return %c0_i32, %c0_i32_0 : i32, i32
  }
  func.func @transform_3(%arg0: i32) -> (i32, i32) {
    %c0_i32 = arith.constant 0 : i32
    %c0_i32_0 = arith.constant 0 : i32
    return %arg0, %c0_i32 : i32, i32
  }
}

module attributes {stable_mosaic.version = 11 : i64} {
  func.func @_mm_kernel(%arg0: i32, %arg1: memref<8x804xbf16, #tpu.memory_space<vmem>>, %arg2: memref<804x64xbf16, #tpu.memory_space<vmem>>, %arg3: memref<1x64xf32, #tpu.memory_space<vmem>>, %arg4: memref<8x64xf32, #tpu.memory_space<vmem>>) attributes {dimension_semantics = [#tpu.dimension_semantics<parallel>], iteration_bounds = array<i64: 1>, scalar_prefetch = 0 : i64, scratch_operands = 0 : i64, tpu.core_type = #tpu.core_type<tc>, window_params = [{transform_indices = @transform_0, window_bounds = array<i64: 8, 804>}, {pipeline_mode = #tpu.pipeline_mode<synchronous>, transform_indices = @transform_1, window_bounds = array<i64: 804, 64>}, {pipeline_mode = #tpu.pipeline_mode<synchronous>, transform_indices = @transform_2, window_bounds = array<i64: 1, 64>}, {transform_indices = @transform_3, window_bounds = array<i64: 8, 64>}]} {
    %c0 = arith.constant 0 : index
    %c0_0 = arith.constant 0 : index
    %0 = vector.load %arg1[%c0, %c0_0] : memref<8x804xbf16, #tpu.memory_space<vmem>>, vector<8x804xbf16>
    %c0_1 = arith.constant 0 : index
    %c0_2 = arith.constant 0 : index
    %1 = vector.load %arg2[%c0_1, %c0_2] : memref<804x64xbf16, #tpu.memory_space<vmem>>, vector<804x64xbf16>
    %cst = arith.constant dense<0.000000e+00> : vector<8x64xf32>
    %2 = tpu.matmul %0, %1, %cst {dimension_numbers = #tpu.dot_dimension_numbers<[1], [0], [0], [1], [0, 0, 1, 1], [], []>} : vector<8x804xbf16>, vector<804x64xbf16>, vector<8x64xf32> -> vector<8x64xf32>
    %c0_3 = arith.constant 0 : index
    %c0_4 = arith.constant 0 : index
    %3 = vector.load %arg3[%c0_3, %c0_4] : memref<1x64xf32, #tpu.memory_space<vmem>>, vector<1x64xf32>
    %4 = vector.broadcast %3 : vector<1x64xf32> to vector<8x64xf32>
    %5 = arith.addf %2, %4 : vector<8x64xf32>
    %c0_5 = arith.constant 0 : index
    %c0_6 = arith.constant 0 : index
    %6 = vector.load %arg4[%c0_5, %c0_6] : memref<8x64xf32, #tpu.memory_space<vmem>>, vector<8x64xf32>
    tpu.vector_store %arg4[%c0_5, %c0_6], %5 {strides = array<i32>} : memref<8x64xf32, #tpu.memory_space<vmem>>, vector<8x64xf32>,
    return
  }
  func.func @transform_0(%arg0: i32) -> (i32, i32) {
    %c0_i32 = arith.constant 0 : i32
    %c0_i32_0 = arith.constant 0 : i32
    return %arg0, %c0_i32 : i32, i32
  }
  func.func @transform_1(%arg0: i32) -> (i32, i32) {
    %c0_i32 = arith.constant 0 : i32
    %c0_i32_0 = arith.constant 0 : i32
    %c0_i32_1 = arith.constant 0 : i32
    return %c0_i32, %c0_i32_0 : i32, i32
  }
  func.func @transform_2(%arg0: i32) -> (i32, i32) {
    %c0_i32 = arith.constant 0 : i32
    %c0_i32_0 = arith.constant 0 : i32
    %c0_i32_1 = arith.constant 0 : i32
    return %c0_i32, %c0_i32_0 : i32, i32
  }
  func.func @transform_3(%arg0: i32) -> (i32, i32) {
    %c0_i32 = arith.constant 0 : i32
    %c0_i32_0 = arith.constant 0 : i32
    return %arg0, %c0_i32 : i32, i32
  }
}

</mosaic_0001>

<llo_original>
// kernel: image_encoder.3
$region0: #{image_encoder.3}
  #allocation0 [shape = 'u32[]', space=smem, size = 0x4, offset = 0x4, fixed_abs, tag = 'smem constant byte address 0x4 - core index']
  #allocation1 [shape = 'u32[144,128]{1,0:T(1,128)}', space=vmem, size = 0x12000, scoped, tag = 'internal scratch']
  %s0 = inlined_call_operand.vmem [shape: bf16[1568,27], index: 0, kind: input, shape index: {}]
  %s1 = inlined_call_operand.vmem [shape: bf16[27,16], index: 1, kind: input, shape index: {}]
  %s2 = inlined_call_operand.vmem [shape: f32[1,16], index: 2, kind: input, shape index: {}]
  %s3 = inlined_call_operand.vmem [shape: bf16[1568,16], index: 3, kind: output, shape index: {}]
  %s4 = sld [smem:[#allocation0]]
  $region45: #{image_encoder.3} parent=0
    _
  %s6 = ssub.s32 1, %s4
  %s7 = scalar_select 0, %s6, %s4
  loop: start=0, step=1, limit=4
  $region2: #{image_encoder.3} parent=0 // loop_pre_header
    _
  $region3: #{image_encoder.3} parent=0 // loop_header
    %s9 = sphi 0, %s13
    %p10 = scmp.ge.s32.totalorder %s9, 4
    %s19 = sphi 0, %s21
    %s22 = sphi 0, %s19
    %s23 = sphi 0, %s22
    %s39 = sphi 0, %s23
    %s43 = sphi 0, %s43
    %s45 = sphi 0, %s43
    %s46 = sphi 0, %s45
    %s60 = sphi 0, %s46
    %s64 = sphi 0, %s64
    %s66 = sphi 0, %s64
    %s67 = sphi 0, %s66
    %s81 = sphi 0, %s67
    %s87 = sphi 0, %s89
    %s90 = sphi 0, %s87
    %s91 = sphi 0, %s90
    %s107 = sphi 0, %s91
  $region4: #{image_encoder.3} parent=0 // loop_header_branch
    %12 = sbr.rel (%p10) target = $region8
  $region5: #{image_encoder.3} parent=0 // loop_body
    %s14 = ssub.s32 %s9, 1
    %s15 = ssub.s32 %s9, 2
    %s16 = sadd.s32 %s9, 1
    %s17 = ssub.s32 %s9, %s16
    %p18 = scmp.eq.s32.totalorder %s17, 0
    %s20 = sadd.s32 %s19, 1
    %s21 = scalar_select %p18, %s19, %s20
    %p24 = pneg %p18
    %p25 = scmp.eq.s32.totalorder %s9, 1
    %p26 = por %p24, %p25
    %p27 = scmp.ne.s32.totalorder %s19, %s22
    %p28 = scmp.eq.s32.totalorder %s9, 0
    %p29 = por %p27, %p28
    %p30 = scmp.ne.s32.totalorder %s19, %s22
    %p31 = scmp.eq.s32.totalorder %s14, 1
    %p32 = por %p30, %p31
    %p33 = scmp.ne.s32.totalorder %s22, %s23
    %p34 = scmp.eq.s32.totalorder %s14, 0
    %p35 = por %p33, %p34
    %p36 = scmp.ne.s32.totalorder %s22, %s23
    %p37 = scmp.eq.s32.totalorder %s15, 1
    %p38 = por %p36, %p37
    %p40 = scmp.ne.s32.totalorder %s23, %s39
    %p41 = scmp.eq.s32.totalorder %s15, 0
    %p42 = por %p40, %p41
    %s44 = sadd.s32 %s43, 1
    %p47 = scmp.eq.s32.totalorder %s9, 1
    %p48 = scmp.ne.s32.totalorder %s43, %s45
    %p49 = scmp.eq.s32.totalorder %s9, 0
    %p50 = por %p48, %p49
    %p51 = scmp.ne.s32.totalorder %s43, %s45
    %p52 = scmp.eq.s32.totalorder %s14, 1
    %p53 = por %p51, %p52
    %p54 = scmp.ne.s32.totalorder %s45, %s46
    %p55 = scmp.eq.s32.totalorder %s14, 0
    %p56 = por %p54, %p55
    %p57 = scmp.ne.s32.totalorder %s45, %s46
    %p58 = scmp.eq.s32.totalorder %s15, 1
    %p59 = por %p57, %p58
    %p61 = scmp.ne.s32.totalorder %s46, %s60
    %p62 = scmp.eq.s32.totalorder %s15, 0
    %p63 = por %p61, %p62
    %s65 = sadd.s32 %s64, 1
    %p68 = scmp.eq.s32.totalorder %s9, 1
    %p69 = scmp.ne.s32.totalorder %s64, %s66
    %p70 = scmp.eq.s32.totalorder %s9, 0
    %p71 = por %p69, %p70
    %p72 = scmp.ne.s32.totalorder %s64, %s66
    %p73 = scmp.eq.s32.totalorder %s14, 1
    %p74 = por %p72, %p73
    %p75 = scmp.ne.s32.totalorder %s66, %s67
    %p76 = scmp.eq.s32.totalorder %s14, 0
    %p77 = por %p75, %p76
    %p78 = scmp.ne.s32.totalorder %s66, %s67
    %p79 = scmp.eq.s32.totalorder %s15, 1
    %p80 = por %p78, %p79
    %p82 = scmp.ne.s32.totalorder %s67, %s81
    %p83 = scmp.eq.s32.totalorder %s15, 0
    %p84 = por %p82, %p83
    %s85 = ssub.s32 %s9, %s16
    %p86 = scmp.eq.s32.totalorder %s85, 0
    %s88 = sadd.s32 %s87, 1
    %s89 = scalar_select %p86, %s87, %s88
    %p92 = pneg %p86
    %p93 = scmp.eq.s32.totalorder %s9, 1
    %p94 = por %p92, %p93
    %p95 = scmp.ne.s32.totalorder %s87, %s90
    %p96 = scmp.eq.s32.totalorder %s9, 0
    %p97 = por %p95, %p96
    %p98 = scmp.ne.s32.totalorder %s87, %s90
    %p99 = scmp.eq.s32.totalorder %s14, 1
    %p100 = por %p98, %p99
    %p101 = scmp.ne.s32.totalorder %s90, %s91
    %p102 = scmp.eq.s32.totalorder %s14, 0
    %p103 = por %p101, %p102
    %p104 = scmp.ne.s32.totalorder %s90, %s91
    %p105 = scmp.eq.s32.totalorder %s15, 1
    %p106 = por %p104, %p105
    %p108 = scmp.ne.s32.totalorder %s91, %s107
    %p109 = scmp.eq.s32.totalorder %s15, 0
    %p110 = por %p108, %p109
    %p111 = scmp.le.s32.totalorder 1, %s9
    %p112 = scmp.lt.s32.totalorder %s9, 3
    %p113 = pnand %p111, %p112
    %p114 = pneg %p113
    // Predicated region
    $region9: #{image_encoder.3} parent=5 // pred_check
      _
    $region10: #{image_encoder.3} parent=5 // pred_check_branch
      %116 = sbr.rel (%p113) target = $region12
    $region11: #{image_encoder.3} parent=5 // pred_region
      %s117 = ssub.s32 %s9, 1
      // Predicated region
      $region13: #{image_encoder.3} parent=11 // pred_check
        %p118 = pneg %p56
      $region14: #{image_encoder.3} parent=11 // pred_check_branch
        %120 = sbr.rel (%p118) target = $region16
      $region15: #{image_encoder.3} parent=11 // pred_region
        _
      $region16: #{image_encoder.3} parent=11 // pred_fallthru
        _
      // Predicated region
      $region17: #{image_encoder.3} parent=11 // pred_check
        %p121 = pneg %p77
      $region18: #{image_encoder.3} parent=11 // pred_check_branch
        %123 = sbr.rel (%p121) target = $region20
      $region19: #{image_encoder.3} parent=11 // pred_region
        _
      $region20: #{image_encoder.3} parent=11 // pred_fallthru
        _
    $region12: #{image_encoder.3} parent=5 // pred_fallthru
      _
    %p124 = scmp.lt.s32.totalorder %s9, 2
    // Predicated region
    $region21: #{image_encoder.3} parent=5 // pred_check
      %p125 = pneg %p124
    $region22: #{image_encoder.3} parent=5 // pred_check_branch
      %127 = sbr.rel (%p125) target = $region24
    $region23: #{image_encoder.3} parent=5 // pred_region
      // Predicated region
      $region25: #{image_encoder.3} parent=23 // pred_check
        %p128 = pneg %p29
      $region26: #{image_encoder.3} parent=23 // pred_check_branch
        %130 = sbr.rel (%p128) target = $region28
      $region27: #{image_encoder.3} parent=23 // pred_region
        %s131 = smul.u32 98, %s9
        %p132 = scmp.lt.s32.totalorder %s131, 195
        %s133 = scalar_select %p132, %s131, 195
        %s134 = smul.addr %s133, 4
        %s135 = scalar_lea.vmem %s0, %s134
        %s136 = smul.u32 98, %s9
      $region28: #{image_encoder.3} parent=23 // pred_fallthru
        _
    $region24: #{image_encoder.3} parent=5 // pred_fallthru
      _
    %p137 = scmp.le.s32.totalorder 1, %s9
    %p138 = scmp.lt.s32.totalorder %s9, 3
    %p139 = pnand %p137, %p138
    %p140 = pneg %p139
    // Predicated region
    $region29: #{image_encoder.3} parent=5 // pred_check
      _
    $region30: #{image_encoder.3} parent=5 // pred_check_branch
      %142 = sbr.rel (%p139) target = $region32
    $region31: #{image_encoder.3} parent=5 // pred_region
      %s143 = ssub.s32 %s9, 1
      %s144 = smul.u32 98, %s14
      %p145 = scmp.lt.s32.totalorder %s144, 195
      %s146 = scalar_select %p145, %s144, 195
      %s147 = smul.addr %s146, 4
      %s148 = scalar_lea.vmem %s0, %s147
      %p149 = pneg %p35
      %p150 = pneg %p32
      %p151 = pneg %p56
      %p152 = pneg %p53
      %p153 = pneg %p77
      %p154 = pneg %p74
      %p155 = pneg %p103
      %p156 = pneg %p100
      %s157 = smul.u32 98, %s14
      %p158 = scmp.lt.s32.totalorder %s157, 195
      %s159 = scalar_select %p158, %s157, 195
      %s160 = smul.addr %s159, 4
      %s161 = scalar_lea.vmem %s3, %s160
      %s162 = smul.u32 98, %s14
      %p163 = scmp.lt.s32.totalorder %s162, 195
      %s164 = scalar_select %p163, %s162, 195
      %s165 = smul.addr %s164, 4
      %s166 = scalar_lea.vmem %s0, %s165
      %s167 = smul.u32 98, %s14
      %s168 = smul.u32 98, %s14
      %p169 = scmp.lt.s32.totalorder %s168, 195
      %s170 = scalar_select %p169, %s168, 195
      %s171 = smul.addr %s170, 4
      %s172 = scalar_lea.vmem %s3, %s171
      %s173 = smul.u32 98, %s14
      %v175 = vld [vmem:[%s166] sm:$0xf]
      %v176 = vld [vmem:[%s166 + $0x4] sm:$0xf]
      %v177 = vld [vmem:[%s166 + $0x8] sm:$0xf]
      %v178 = vld [vmem:[%s166 + $0xc] sm:$0xf]
      %v179 = vld [vmem:[%s166 + $0x10] sm:$0xf]
      %v180 = vld [vmem:[%s166 + $0x14] sm:$0xf]
      %v181 = vld [vmem:[%s166 + $0x18] sm:$0xf]
      %v182 = vld [vmem:[%s166 + $0x1c] sm:$0xf]
      %v183 = vld [vmem:[%s166 + $0x20] sm:$0xf]
      %v184 = vld [vmem:[%s166 + $0x24] sm:$0xf]
      %v185 = vld [vmem:[%s166 + $0x28] sm:$0xf]
      %v186 = vld [vmem:[%s166 + $0x2c] sm:$0xf]
      %v187 = vld [vmem:[%s166 + $0x30] sm:$0xf]
      %v188 = vld [vmem:[%s166 + $0x34] sm:$0xf]
      %v189 = vld [vmem:[%s166 + $0x38] sm:$0xf]
      %v190 = vld [vmem:[%s166 + $0x3c] sm:$0xf]
      %v191 = vld [vmem:[%s166 + $0x40] sm:$0xf]
      %v192 = vld [vmem:[%s166 + $0x44] sm:$0xf]
      %v193 = vld [vmem:[%s166 + $0x48] sm:$0xf]
      %v194 = vld [vmem:[%s166 + $0x4c] sm:$0xf]
      %v195 = vld [vmem:[%s166 + $0x50] sm:$0xf]
      %v196 = vld [vmem:[%s166 + $0x54] sm:$0xf]
      %v197 = vld [vmem:[%s166 + $0x58] sm:$0xf]
      %v198 = vld [vmem:[%s166 + $0x5c] sm:$0xf]
      %v199 = vld [vmem:[%s166 + $0x60] sm:$0xf]
      %v200 = vld [vmem:[%s166 + $0x64] sm:$0xf]
      %v201 = vld [vmem:[%s166 + $0x68] sm:$0xf]
      %v202 = vld [vmem:[%s166 + $0x6c] sm:$0xf]
      %v203 = vld [vmem:[%s166 + $0x70] sm:$0xf]
      %v204 = vld [vmem:[%s166 + $0x74] sm:$0xf]
      %v205 = vld [vmem:[%s166 + $0x78] sm:$0xf]
      %v206 = vld [vmem:[%s166 + $0x7c] sm:$0xf]
      %v207 = vld [vmem:[%s166 + $0x80] sm:$0xf]
      %v208 = vld [vmem:[%s166 + $0x84] sm:$0xf]
      %v209 = vld [vmem:[%s166 + $0x88] sm:$0xf]
      %v210 = vld [vmem:[%s166 + $0x8c] sm:$0xf]
      %v211 = vld [vmem:[%s166 + $0x90] sm:$0xf]
      %v212 = vld [vmem:[%s166 + $0x94] sm:$0xf]
      %v213 = vld [vmem:[%s166 + $0x98] sm:$0xf]
      %v214 = vld [vmem:[%s166 + $0x9c] sm:$0xf]
      %v215 = vld [vmem:[%s166 + $0xa0] sm:$0xf]
      %v216 = vld [vmem:[%s166 + $0xa4] sm:$0xf]
      %v217 = vld [vmem:[%s166 + $0xa8] sm:$0xf]
      %v218 = vld [vmem:[%s166 + $0xac] sm:$0xf]
      %v219 = vld [vmem:[%s166 + $0xb0] sm:$0xf]
      %v220 = vld [vmem:[%s166 + $0xb4] sm:$0xf]
      %v221 = vld [vmem:[%s166 + $0xb8] sm:$0xf]
      %v222 = vld [vmem:[%s166 + $0xbc] sm:$0xf]
      %v223 = vld [vmem:[%s166 + $0xc0] sm:$0xf]
      %v224 = vld [vmem:[%s166 + $0xc4] sm:$0xf]
      %v225 = vld [vmem:[%s166 + $0xc8] sm:$0xf]
      %v226 = vld [vmem:[%s166 + $0xcc] sm:$0xf]
      %v227 = vld [vmem:[%s166 + $0xd0] sm:$0xf]
      %v228 = vld [vmem:[%s166 + $0xd4] sm:$0xf]
      %v229 = vld [vmem:[%s166 + $0xd8] sm:$0xf]
      %v230 = vld [vmem:[%s166 + $0xdc] sm:$0xf]
      %v231 = vld [vmem:[%s166 + $0xe0] sm:$0xf]
      %v232 = vld [vmem:[%s166 + $0xe4] sm:$0xf]
      %v233 = vld [vmem:[%s166 + $0xe8] sm:$0xf]
      %v234 = vld [vmem:[%s166 + $0xec] sm:$0xf]
      %v235 = vld [vmem:[%s166 + $0xf0] sm:$0xf]
      %v236 = vld [vmem:[%s166 + $0xf4] sm:$0xf]
      %v237 = vld [vmem:[%s166 + $0xf8] sm:$0xf]
      %v238 = vld [vmem:[%s166 + $0xfc] sm:$0xf]
      %v239 = vld [vmem:[%s166 + $0x100] sm:$0xf]
      %v240 = vld [vmem:[%s166 + $0x104] sm:$0xf]
      %v241 = vld [vmem:[%s166 + $0x108] sm:$0xf]
      %v242 = vld [vmem:[%s166 + $0x10c] sm:$0xf]
      %v243 = vld [vmem:[%s166 + $0x110] sm:$0xf]
      %v244 = vld [vmem:[%s166 + $0x114] sm:$0xf]
      %v245 = vld [vmem:[%s166 + $0x118] sm:$0xf]
      %v246 = vld [vmem:[%s166 + $0x11c] sm:$0xf]
      %v247 = vld [vmem:[%s166 + $0x120] sm:$0xf]
      %v248 = vld [vmem:[%s166 + $0x124] sm:$0xf]
      %v249 = vld [vmem:[%s166 + $0x128] sm:$0xf]
      %v250 = vld [vmem:[%s166 + $0x12c] sm:$0xf]
      %v251 = vld [vmem:[%s166 + $0x130] sm:$0xf]
      %v252 = vld [vmem:[%s166 + $0x134] sm:$0xf]
      %v253 = vld [vmem:[%s166 + $0x138] sm:$0xf]
      %v254 = vld [vmem:[%s166 + $0x13c] sm:$0xf]
      %v255 = vld [vmem:[%s166 + $0x140] sm:$0xf]
      %v256 = vld [vmem:[%s166 + $0x144] sm:$0xf]
      %v257 = vld [vmem:[%s166 + $0x148] sm:$0xf]
      %v258 = vld [vmem:[%s166 + $0x14c] sm:$0xf]
      %v259 = vld [vmem:[%s166 + $0x150] sm:$0xf]
      %v260 = vld [vmem:[%s166 + $0x154] sm:$0xf]
      %v261 = vld [vmem:[%s166 + $0x158] sm:$0xf]
      %v262 = vld [vmem:[%s166 + $0x15c] sm:$0xf]
      %v263 = vld [vmem:[%s166 + $0x160] sm:$0xf]
      %v264 = vld [vmem:[%s166 + $0x164] sm:$0xf]
      %v265 = vld [vmem:[%s166 + $0x168] sm:$0xf]
      %v266 = vld [vmem:[%s166 + $0x16c] sm:$0xf]
      %v267 = vld [vmem:[%s166 + $0x170] sm:$0xf]
      %v268 = vld [vmem:[%s166 + $0x174] sm:$0xf]
      %v269 = vld [vmem:[%s166 + $0x178] sm:$0xf]
      %v270 = vld [vmem:[%s166 + $0x17c] sm:$0xf]
      %v271 = vld [vmem:[%s166 + $0x180] sm:$0xf]
      %v272 = vld [vmem:[%s166 + $0x184] sm:$0xf]
      %v273 = vld [vmem:[%s1] sm:$0xf]
      %v274 = vld [vmem:[%s1 + $0x4] sm:$0xf]
      %v275 = vld [vmem:[%s1 + $0x8] sm:$0xf]
      %v276 = vld [vmem:[%s1 + $0xc] sm:$0x3]
      %v277 = vld [vmem:[%s2] sm:$0x1]
      %v279 = vlaneseq
      %v280 = vshrl.u32 %v279, 7
      %v281 = vsub.s32 0, %v280
      %v282 = vrot.slane %v277, %v281
      %v382 = vunpack.c.l.b16 %v175
      %v383 = vunpack.c.l.b16 %v176
      %v384 = vunpack.c.l.b16 %v177
      %v385 = vunpack.c.l.b16 %v178
      %v386 = vunpack.c.l.b16 %v179
      %v387 = vunpack.c.l.b16 %v180
      %v388 = vunpack.c.l.b16 %v181
      %v389 = vunpack.c.l.b16 %v182
      %v390 = vunpack.c.l.b16 %v183
      %v391 = vunpack.c.l.b16 %v184
      %v392 = vunpack.c.l.b16 %v185
      %v393 = vunpack.c.l.b16 %v186
      %v394 = vunpack.c.l.b16 %v187
      %v395 = vunpack.c.l.b16 %v188
      %v396 = vunpack.c.l.b16 %v189
      %v397 = vunpack.c.l.b16 %v190
      %v398 = vunpack.c.l.b16 %v191
      %v399 = vunpack.c.l.b16 %v192
      %v400 = vunpack.c.l.b16 %v193
      %v401 = vunpack.c.l.b16 %v194
      %v402 = vunpack.c.l.b16 %v195
      %v403 = vunpack.c.l.b16 %v196
      %v404 = vunpack.c.l.b16 %v197
      %v405 = vunpack.c.l.b16 %v198
      %v406 = vunpack.c.l.b16 %v199
      %v407 = vunpack.c.l.b16 %v200
      %v408 = vunpack.c.l.b16 %v201
      %v409 = vunpack.c.l.b16 %v202
      %v410 = vunpack.c.l.b16 %v203
      %v411 = vunpack.c.l.b16 %v204
      %v412 = vunpack.c.l.b16 %v205
      %v413 = vunpack.c.l.b16 %v206
      %v414 = vunpack.c.l.b16 %v207
      %v415 = vunpack.c.l.b16 %v208
      %v416 = vunpack.c.l.b16 %v209
      %v417 = vunpack.c.l.b16 %v210
      %v418 = vunpack.c.l.b16 %v211
      %v419 = vunpack.c.l.b16 %v212
      %v420 = vunpack.c.l.b16 %v213
      %v421 = vunpack.c.l.b16 %v214
      %v422 = vunpack.c.l.b16 %v215
      %v423 = vunpack.c.l.b16 %v216
      %v424 = vunpack.c.l.b16 %v217
      %v425 = vunpack.c.l.b16 %v218
      %v426 = vunpack.c.l.b16 %v219
      %v427 = vunpack.c.l.b16 %v220
      %v428 = vunpack.c.l.b16 %v221
      %v429 = vunpack.c.l.b16 %v222
      %v430 = vunpack.c.l.b16 %v223
      %v431 = vunpack.c.l.b16 %v224
      %v432 = vunpack.c.l.b16 %v225
      %v433 = vunpack.c.l.b16 %v226
      %v434 = vunpack.c.l.b16 %v227
      %v435 = vunpack.c.l.b16 %v228
      %v436 = vunpack.c.l.b16 %v229
      %v437 = vunpack.c.l.b16 %v230
      %v438 = vunpack.c.l.b16 %v231
      %v439 = vunpack.c.l.b16 %v232
      %v440 = vunpack.c.l.b16 %v233
      %v441 = vunpack.c.l.b16 %v234
      %v442 = vunpack.c.l.b16 %v235
      %v443 = vunpack.c.l.b16 %v236
      %v444 = vunpack.c.l.b16 %v237
      %v445 = vunpack.c.l.b16 %v238
      %v446 = vunpack.c.l.b16 %v239
      %v447 = vunpack.c.l.b16 %v240
      %v448 = vunpack.c.l.b16 %v241
      %v449 = vunpack.c.l.b16 %v242
      %v450 = vunpack.c.l.b16 %v243
      %v451 = vunpack.c.l.b16 %v244
      %v452 = vunpack.c.l.b16 %v245
      %v453 = vunpack.c.l.b16 %v246
      %v454 = vunpack.c.l.b16 %v247
      %v455 = vunpack.c.l.b16 %v248
      %v456 = vunpack.c.l.b16 %v249
      %v457 = vunpack.c.l.b16 %v250
      %v458 = vunpack.c.l.b16 %v251
      %v459 = vunpack.c.l.b16 %v252
      %v460 = vunpack.c.l.b16 %v253
      %v461 = vunpack.c.l.b16 %v254
      %v462 = vunpack.c.l.b16 %v255
      %v463 = vunpack.c.l.b16 %v256
      %v464 = vunpack.c.l.b16 %v257
      %v465 = vunpack.c.l.b16 %v258
      %v466 = vunpack.c.l.b16 %v259
      %v467 = vunpack.c.l.b16 %v260
      %v468 = vunpack.c.l.b16 %v261
      %v469 = vunpack.c.l.b16 %v262
      %v470 = vunpack.c.l.b16 %v263
      %v471 = vunpack.c.l.b16 %v264
      %v472 = vunpack.c.l.b16 %v265
      %v473 = vunpack.c.l.b16 %v266
      %v474 = vunpack.c.l.b16 %v267
      %v475 = vunpack.c.l.b16 %v268
      %v476 = vunpack.c.l.b16 %v269
      %v477 = vunpack.c.l.b16 %v270
      %v478 = vunpack.c.l.b16 %v271
      %v479 = vunpack.c.l.b16 %v272
      %v480 = vpack.c.b16 %v383, %v382
      %v481 = vpack.c.b16 %v385, %v384
      %v482 = vpack.c.b16 %v387, %v386
      %v483 = vpack.c.b16 %v389, %v388
      %v484 = vpack.c.b16 %v391, %v390
      %v485 = vpack.c.b16 %v393, %v392
      %v486 = vpack.c.b16 %v395, %v394
      %v487 = vpack.c.b16 %v397, %v396
      %v488 = vpack.c.b16 %v399, %v398
      %v489 = vpack.c.b16 %v401, %v400
      %v490 = vpack.c.b16 %v403, %v402
      %v491 = vpack.c.b16 %v405, %v404
      %v492 = vpack.c.b16 %v407, %v406
      %v493 = vpack.c.b16 %v409, %v408
      %v494 = vpack.c.b16 %v411, %v410
      %v495 = vpack.c.b16 %v413, %v412
      %v496 = vpack.c.b16 %v415, %v414
      %v497 = vpack.c.b16 %v417, %v416
      %v498 = vpack.c.b16 %v419, %v418
      %v499 = vpack.c.b16 %v421, %v420
      %v500 = vpack.c.b16 %v423, %v422
      %v501 = vpack.c.b16 %v425, %v424
      %v502 = vpack.c.b16 %v427, %v426
      %v503 = vpack.c.b16 %v429, %v428
      %v504 = vpack.c.b16 %v431, %v430
      %v505 = vpack.c.b16 %v433, %v432
      %v506 = vpack.c.b16 %v435, %v434
      %v507 = vpack.c.b16 %v437, %v436
      %v508 = vpack.c.b16 %v439, %v438
      %v509 = vpack.c.b16 %v441, %v440
      %v510 = vpack.c.b16 %v443, %v442
      %v511 = vpack.c.b16 %v445, %v444
      %v512 = vpack.c.b16 %v447, %v446
      %v513 = vpack.c.b16 %v449, %v448
      %v514 = vpack.c.b16 %v451, %v450
      %v515 = vpack.c.b16 %v453, %v452
      %v516 = vpack.c.b16 %v455, %v454
      %v517 = vpack.c.b16 %v457, %v456
      %v518 = vpack.c.b16 %v459, %v458
      %v519 = vpack.c.b16 %v461, %v460
      %v520 = vpack.c.b16 %v463, %v462
      %v521 = vpack.c.b16 %v465, %v464
      %v522 = vpack.c.b16 %v467, %v466
      %v523 = vpack.c.b16 %v469, %v468
      %v524 = vpack.c.b16 %v471, %v470
      %v525 = vpack.c.b16 %v473, %v472
      %v526 = vpack.c.b16 %v475, %v474
      %v527 = vpack.c.b16 %v477, %v476
      %v528 = vpack.c.b16 %v479, %v478
      %v533 = vunpack.c.l.b16 %v273
      %v534 = vunpack.c.l.b16 %v274
      %v535 = vunpack.c.l.b16 %v275
      %v536 = vunpack.c.l.b16 %v276
      %v537 = vpack.c.b16 %v534, %v533
      %v538 = vpack.c.b16 %v536, %v535
      %vm540 = vcmask 220160
      %v542 = vsel %vm540, %v480, 0
      %v545 = vsel %vm540, %v481, 0
      %v548 = vsel %vm540, %v482, 0
      %v551 = vsel %vm540, %v483, 0
      %v554 = vsel %vm540, %v484, 0
      %v557 = vsel %vm540, %v485, 0
      %v560 = vsel %vm540, %v486, 0
      %v563 = vsel %vm540, %v487, 0
      %v566 = vsel %vm540, %v488, 0
      %v569 = vsel %vm540, %v489, 0
      %v572 = vsel %vm540, %v490, 0
      %v575 = vsel %vm540, %v491, 0
      %v578 = vsel %vm540, %v492, 0
      %v581 = vsel %vm540, %v493, 0
      %v584 = vsel %vm540, %v494, 0
      %v587 = vsel %vm540, %v495, 0
      %v590 = vsel %vm540, %v496, 0
      %v593 = vsel %vm540, %v497, 0
      %v596 = vsel %vm540, %v498, 0
      %v599 = vsel %vm540, %v499, 0
      %v602 = vsel %vm540, %v500, 0
      %v605 = vsel %vm540, %v501, 0
      %v608 = vsel %vm540, %v502, 0
      %v611 = vsel %vm540, %v503, 0
      %v614 = vsel %vm540, %v504, 0
      %v617 = vsel %vm540, %v505, 0
      %v620 = vsel %vm540, %v506, 0
      %v623 = vsel %vm540, %v507, 0
      %v626 = vsel %vm540, %v508, 0
      %v629 = vsel %vm540, %v509, 0
      %v632 = vsel %vm540, %v510, 0
      %v635 = vsel %vm540, %v511, 0
      %v638 = vsel %vm540, %v512, 0
      %v641 = vsel %vm540, %v513, 0
      %v644 = vsel %vm540, %v514, 0
      %v647 = vsel %vm540, %v515, 0
      %v650 = vsel %vm540, %v516, 0
      %v653 = vsel %vm540, %v517, 0
      %v656 = vsel %vm540, %v518, 0
      %v659 = vsel %vm540, %v519, 0
      %v662 = vsel %vm540, %v520, 0
      %v665 = vsel %vm540, %v521, 0
      %v668 = vsel %vm540, %v522, 0
      %v671 = vsel %vm540, %v523, 0
      %v674 = vsel %vm540, %v524, 0
      %v677 = vsel %vm540, %v525, 0
      %v680 = vsel %vm540, %v526, 0
      %v683 = vsel %vm540, %v527, 0
      %v686 = vsel %vm540, %v528, 0
      %vm688 = vcmask 1044480
      %vm689 = vcmask 1045504
      %v690 = vsel %vm688, 4294967295, 65535
      %v691 = vsel %vm689, %v690, 0
      %v693 = vand.u32 %v538, %v691
      %695 = vmatprep.subr.bf16.mxu0 0
      %696 = vmatpush1.bf16.msra.mxu0 %v537
      %697 = vmatprep.subr.bf16.mxu0 0
      %698 = vmatpush1.bf16.msra.mxu0 %v693
      %699 = vmatprep.subr.bf16.mxu0 0
      %700 = vmatpush1.bf16.msra.mxu0 0
      %701 = vmatprep.subr.bf16.mxu0 0
      %702 = vmatpush1.bf16.msra.mxu0 0
      %703 = vmatprep.subr.bf16.mxu0 0
      %704 = vmatpush1.bf16.msra.mxu0 0
      %705 = vmatprep.subr.bf16.mxu0 0
      %706 = vmatpush1.bf16.msra.mxu0 0
      %707 = vmatprep.subr.bf16.mxu0 0
      %708 = vmatpush1.bf16.msra.mxu0 0
      %709 = vmatprep.subr.bf16.mxu0 0
      %710 = vmatpush1.bf16.msra.mxu0 0
      %711 = vmatprep.subr.bf16.mxu0 0
      %712 = vmatpush1.bf16.msra.mxu0 0
      %713 = vmatprep.subr.bf16.mxu0 0
      %714 = vmatpush1.bf16.msra.mxu0 0
      %715 = vmatprep.subr.bf16.mxu0 0
      %716 = vmatpush1.bf16.msra.mxu0 0
      %717 = vmatprep.subr.bf16.mxu0 0
      %718 = vmatpush1.bf16.msra.mxu0 0
      %719 = vmatprep.subr.bf16.mxu0 0
      %720 = vmatpush1.bf16.msra.mxu0 0
      %721 = vmatprep.subr.bf16.mxu0 0
      %722 = vmatpush1.bf16.msra.mxu0 0
      %723 = vmatprep.subr.bf16.mxu0 0
      %724 = vmatpush1.bf16.msra.mxu0 0
      %725 = vmatprep.subr.bf16.mxu0 0
      %726 = vmatpush1.bf16.msra.mxu0 0
      %727 = vmatprep.mubr.bf16.mxu0 0
      %728 = vmatmul.mubr.bf16.gmra.mrb[0].mxu0 %v542
      %v729 = vpop.f32.mrb[0].mxu0
      %v730 = vadd.f32 %v282, %v729
      %v731 = vpop.f32.mrb[0].mxu0
      %v732 = vpop.f32.mrb[0].mxu0
      %v733 = vadd.f32 %v282, %v732
      %v734 = vpop.f32.mrb[0].mxu0
      %735 = vmatprep.mubr.bf16.mxu0 0
      %736 = vmatmul.mubr.bf16.gmra.mrb[0].mxu0 %v545
      %v737 = vpop.f32.mrb[0].mxu0
      %v738 = vadd.f32 %v282, %v737
      %v739 = vpop.f32.mrb[0].mxu0
      %v740 = vpop.f32.mrb[0].mxu0
      %v741 = vadd.f32 %v282, %v740
      %v742 = vpop.f32.mrb[0].mxu0
      %743 = vmatprep.mubr.bf16.mxu0 0
      %744 = vmatmul.mubr.bf16.gmra.mrb[0].mxu0 %v548
      %v745 = vpop.f32.mrb[0].mxu0
      %v746 = vadd.f32 %v282, %v745
      %v747 = vpop.f32.mrb[0].mxu0
      %v748 = vpop.f32.mrb[0].mxu0
      %v749 = vadd.f32 %v282, %v748
      %v750 = vpop.f32.mrb[0].mxu0
      %751 = vmatprep.mubr.bf16.mxu0 0
      %752 = vmatmul.mubr.bf16.gmra.mrb[0].mxu0 %v551
      %v753 = vpop.f32.mrb[0].mxu0
      %v754 = vadd.f32 %v282, %v753
      %v755 = vpop.f32.mrb[0].mxu0
      %v756 = vpop.f32.mrb[0].mxu0
      %v757 = vadd.f32 %v282, %v756
      %v758 = vpop.f32.mrb[0].mxu0
      %759 = vmatprep.mubr.bf16.mxu0 0
      %760 = vmatmul.mubr.bf16.gmra.mrb[0].mxu0 %v554
      %v761 = vpop.f32.mrb[0].mxu0
      %v762 = vadd.f32 %v282, %v761
      %v763 = vpop.f32.mrb[0].mxu0
      %v764 = vpop.f32.mrb[0].mxu0
      %v765 = vadd.f32 %v282, %v764
      %v766 = vpop.f32.mrb[0].mxu0
      %767 = vmatprep.mubr.bf16.mxu0 0
      %768 = vmatmul.mubr.bf16.gmra.mrb[0].mxu0 %v557
      %v769 = vpop.f32.mrb[0].mxu0
      %v770 = vadd.f32 %v282, %v769
      %v771 = vpop.f32.mrb[0].mxu0
      %v772 = vpop.f32.mrb[0].mxu0
      %v773 = vadd.f32 %v282, %v772
      %v774 = vpop.f32.mrb[0].mxu0
      %775 = vmatprep.mubr.bf16.mxu0 0
      %776 = vmatmul.mubr.bf16.gmra.mrb[0].mxu0 %v560
      %v777 = vpop.f32.mrb[0].mxu0
      %v778 = vadd.f32 %v282, %v777
      %v779 = vpop.f32.mrb[0].mxu0
      %v780 = vpop.f32.mrb[0].mxu0
      %v781 = vadd.f32 %v282, %v780
      %v782 = vpop.f32.mrb[0].mxu0
      %783 = vmatprep.mubr.bf16.mxu0 0
      %784 = vmatmul.mubr.bf16.gmra.mrb[0].mxu0 %v563
      %v785 = vpop.f32.mrb[0].mxu0
      %v786 = vadd.f32 %v282, %v785
      %v787 = vpop.f32.mrb[0].mxu0
      %v788 = vpop.f32.mrb[0].mxu0
      %v789 = vadd.f32 %v282, %v788
      %v790 = vpop.f32.mrb[0].mxu0
      %791 = vmatprep.mubr.bf16.mxu0 0
      %792 = vmatmul.mubr.bf16.gmra.mrb[0].mxu0 %v566
      %v793 = vpop.f32.mrb[0].mxu0
      %v794 = vadd.f32 %v282, %v793
      %v795 = vpop.f32.mrb[0].mxu0
      %v796 = vpop.f32.mrb[0].mxu0
      %v797 = vadd.f32 %v282, %v796
      %v798 = vpop.f32.mrb[0].mxu0
      %799 = vmatprep.mubr.bf16.mxu0 0
      %800 = vmatmul.mubr.bf16.gmra.mrb[0].mxu0 %v569
      %v801 = vpop.f32.mrb[0].mxu0
      %v802 = vadd.f32 %v282, %v801
      %v803 = vpop.f32.mrb[0].mxu0
      %v804 = vpop.f32.mrb[0].mxu0
      %v805 = vadd.f32 %v282, %v804
      %v806 = vpop.f32.mrb[0].mxu0
      %807 = vmatprep.mubr.bf16.mxu0 0
      %808 = vmatmul.mubr.bf16.gmra.mrb[0].mxu0 %v572
      %v809 = vpop.f32.mrb[0].mxu0
      %v810 = vadd.f32 %v282, %v809
      %v811 = vpop.f32.mrb[0].mxu0
      %v812 = vpop.f32.mrb[0].mxu0
      %v813 = vadd.f32 %v282, %v812
      %v814 = vpop.f32.mrb[0].mxu0
      %815 = vmatprep.mubr.bf16.mxu0 0
      %816 = vmatmul.mubr.bf16.gmra.mrb[0].mxu0 %v575
      %v817 = vpop.f32.mrb[0].mxu0
      %v818 = vadd.f32 %v282, %v817
      %v819 = vpop.f32.mrb[0].mxu0
      %v820 = vpop.f32.mrb[0].mxu0
      %v821 = vadd.f32 %v282, %v820
      %v822 = vpop.f32.mrb[0].mxu0
      %823 = vmatprep.mubr.bf16.mxu0 0
      %824 = vmatmul.mubr.bf16.gmra.mrb[0].mxu0 %v578
      %v825 = vpop.f32.mrb[0].mxu0
      %v826 = vadd.f32 %v282, %v825
      %v827 = vpop.f32.mrb[0].mxu0
      %v828 = vpop.f32.mrb[0].mxu0
      %v829 = vadd.f32 %v282, %v828
      %v830 = vpop.f32.mrb[0].mxu0
      %831 = vmatprep.mubr.bf16.mxu0 0
      %832 = vmatmul.mubr.bf16.gmra.mrb[0].mxu0 %v581
      %v833 = vpop.f32.mrb[0].mxu0
      %v834 = vadd.f32 %v282, %v833
      %v835 = vpop.f32.mrb[0].mxu0
      %v836 = vpop.f32.mrb[0].mxu0
      %v837 = vadd.f32 %v282, %v836
      %v838 = vpop.f32.mrb[0].mxu0
      %839 = vmatprep.mubr.bf16.mxu0 0
      %840 = vmatmul.mubr.bf16.gmra.mrb[0].mxu0 %v584
      %v841 = vpop.f32.mrb[0].mxu0
      %v842 = vadd.f32 %v282, %v841
      %v843 = vpop.f32.mrb[0].mxu0
      %v844 = vpop.f32.mrb[0].mxu0
      %v845 = vadd.f32 %v282, %v844
      %v846 = vpop.f32.mrb[0].mxu0
      %847 = vmatprep.mubr.bf16.mxu0 0
      %848 = vmatmul.mubr.bf16.gmra.mrb[0].mxu0 %v587
      %v849 = vpop.f32.mrb[0].mxu0
      %v850 = vadd.f32 %v282, %v849
      %v851 = vpop.f32.mrb[0].mxu0
      %v852 = vpop.f32.mrb[0].mxu0
      %v853 = vadd.f32 %v282, %v852
      %v854 = vpop.f32.mrb[0].mxu0
      %855 = vmatprep.mubr.bf16.mxu0 0
      %856 = vmatmul.mubr.bf16.gmra.mrb[0].mxu0 %v590
      %v857 = vpop.f32.mrb[0].mxu0
      %v858 = vadd.f32 %v282, %v857
      %v859 = vpop.f32.mrb[0].mxu0
      %v860 = vpop.f32.mrb[0].mxu0
      %v861 = vadd.f32 %v282, %v860
      %v862 = vpop.f32.mrb[0].mxu0
      %863 = vmatprep.mubr.bf16.mxu0 0
      %864 = vmatmul.mubr.bf16.gmra.mrb[0].mxu0 %v593
      %v865 = vpop.f32.mrb[0].mxu0
      %v866 = vadd.f32 %v282, %v865
      %v867 = vpop.f32.mrb[0].mxu0
      %v868 = vpop.f32.mrb[0].mxu0
      %v869 = vadd.f32 %v282, %v868
      %v870 = vpop.f32.mrb[0].mxu0
      %871 = vmatprep.mubr.bf16.mxu0 0
      %872 = vmatmul.mubr.bf16.gmra.mrb[0].mxu0 %v596
      %v873 = vpop.f32.mrb[0].mxu0
      %v874 = vadd.f32 %v282, %v873
      %v875 = vpop.f32.mrb[0].mxu0
      %v876 = vpop.f32.mrb[0].mxu0
      %v877 = vadd.f32 %v282, %v876
      %v878 = vpop.f32.mrb[0].mxu0
      %879 = vmatprep.mubr.bf16.mxu0 0
      %880 = vmatmul.mubr.bf16.gmra.mrb[0].mxu0 %v599
      %v881 = vpop.f32.mrb[0].mxu0
      %v882 = vadd.f32 %v282, %v881
      %v883 = vpop.f32.mrb[0].mxu0
      %v884 = vpop.f32.mrb[0].mxu0
      %v885 = vadd.f32 %v282, %v884
      %v886 = vpop.f32.mrb[0].mxu0
      %887 = vmatprep.mubr.bf16.mxu0 0
      %888 = vmatmul.mubr.bf16.gmra.mrb[0].mxu0 %v602
      %v889 = vpop.f32.mrb[0].mxu0
      %v890 = vadd.f32 %v282, %v889
      %v891 = vpop.f32.mrb[0].mxu0
      %v892 = vpop.f32.mrb[0].mxu0
      %v893 = vadd.f32 %v282, %v892
      %v894 = vpop.f32.mrb[0].mxu0
      %895 = vmatprep.mubr.bf16.mxu0 0
      %896 = vmatmul.mubr.bf16.gmra.mrb[0].mxu0 %v605
      %v897 = vpop.f32.mrb[0].mxu0
      %v898 = vadd.f32 %v282, %v897
      %v899 = vpop.f32.mrb[0].mxu0
      %v900 = vpop.f32.mrb[0].mxu0
      %v901 = vadd.f32 %v282, %v900
      %v902 = vpop.f32.mrb[0].mxu0
      %903 = vmatprep.mubr.bf16.mxu0 0
      %904 = vmatmul.mubr.bf16.gmra.mrb[0].mxu0 %v608
      %v905 = vpop.f32.mrb[0].mxu0
      %v906 = vadd.f32 %v282, %v905
      %v907 = vpop.f32.mrb[0].mxu0
      %v908 = vpop.f32.mrb[0].mxu0
      %v909 = vadd.f32 %v282, %v908
      %v910 = vpop.f32.mrb[0].mxu0
      %911 = vmatprep.mubr.bf16.mxu0 0
      %912 = vmatmul.mubr.bf16.gmra.mrb[0].mxu0 %v611
      %v913 = vpop.f32.mrb[0].mxu0
      %v914 = vadd.f32 %v282, %v913
      %v915 = vpop.f32.mrb[0].mxu0
      %v916 = vpop.f32.mrb[0].mxu0
      %v917 = vadd.f32 %v282, %v916
      %v918 = vpop.f32.mrb[0].mxu0
      %919 = vmatprep.mubr.bf16.mxu0 0
      %920 = vmatmul.mubr.bf16.gmra.mrb[0].mxu0 %v614
      %v921 = vpop.f32.mrb[0].mxu0
      %v922 = vadd.f32 %v282, %v921
      %v923 = vpop.f32.mrb[0].mxu0
      %v924 = vpop.f32.mrb[0].mxu0
      %v925 = vadd.f32 %v282, %v924
      %v926 = vpop.f32.mrb[0].mxu0
      %927 = vmatprep.mubr.bf16.mxu0 0
      %928 = vmatmul.mubr.bf16.gmra.mrb[0].mxu0 %v617
      %v929 = vpop.f32.mrb[0].mxu0
      %v930 = vadd.f32 %v282, %v929
      %v931 = vpop.f32.mrb[0].mxu0
      %v932 = vpop.f32.mrb[0].mxu0
      %v933 = vadd.f32 %v282, %v932
      %v934 = vpop.f32.mrb[0].mxu0
      %935 = vmatprep.mubr.bf16.mxu0 0
      %936 = vmatmul.mubr.bf16.gmra.mrb[0].mxu0 %v620
      %v937 = vpop.f32.mrb[0].mxu0
      %v938 = vadd.f32 %v282, %v937
      %v939 = vpop.f32.mrb[0].mxu0
      %v940 = vpop.f32.mrb[0].mxu0
      %v941 = vadd.f32 %v282, %v940
      %v942 = vpop.f32.mrb[0].mxu0
      %943 = vmatprep.mubr.bf16.mxu0 0
      %944 = vmatmul.mubr.bf16.gmra.mrb[0].mxu0 %v623
      %v945 = vpop.f32.mrb[0].mxu0
      %v946 = vadd.f32 %v282, %v945
      %v947 = vpop.f32.mrb[0].mxu0
      %v948 = vpop.f32.mrb[0].mxu0
      %v949 = vadd.f32 %v282, %v948
      %v950 = vpop.f32.mrb[0].mxu0
      %951 = vmatprep.mubr.bf16.mxu0 0
      %952 = vmatmul.mubr.bf16.gmra.mrb[0].mxu0 %v626
      %v953 = vpop.f32.mrb[0].mxu0
      %v954 = vadd.f32 %v282, %v953
      %v955 = vpop.f32.mrb[0].mxu0
      %v956 = vpop.f32.mrb[0].mxu0
      %v957 = vadd.f32 %v282, %v956
      %v958 = vpop.f32.mrb[0].mxu0
      %959 = vmatprep.mubr.bf16.mxu0 0
      %960 = vmatmul.mubr.bf16.gmra.mrb[0].mxu0 %v629
      %v961 = vpop.f32.mrb[0].mxu0
      %v962 = vadd.f32 %v282, %v961
      %v963 = vpop.f32.mrb[0].mxu0
      %v964 = vpop.f32.mrb[0].mxu0
      %v965 = vadd.f32 %v282, %v964
      %v966 = vpop.f32.mrb[0].mxu0
      %967 = vmatprep.mubr.bf16.mxu0 0
      %968 = vmatmul.mubr.bf16.gmra.mrb[0].mxu0 %v632
      %v969 = vpop.f32.mrb[0].mxu0
      %v970 = vadd.f32 %v282, %v969
      %v971 = vpop.f32.mrb[0].mxu0
      %v972 = vpop.f32.mrb[0].mxu0
      %v973 = vadd.f32 %v282, %v972
      %v974 = vpop.f32.mrb[0].mxu0
      %975 = vmatprep.mubr.bf16.mxu0 0
      %976 = vmatmul.mubr.bf16.gmra.mrb[0].mxu0 %v635
      %v977 = vpop.f32.mrb[0].mxu0
      %v978 = vadd.f32 %v282, %v977
      %v979 = vpop.f32.mrb[0].mxu0
      %v980 = vpop.f32.mrb[0].mxu0
      %v981 = vadd.f32 %v282, %v980
      %v982 = vpop.f32.mrb[0].mxu0
      %983 = vmatprep.mubr.bf16.mxu0 0
      %984 = vmatmul.mubr.bf16.gmra.mrb[0].mxu0 %v638
      %v985 = vpop.f32.mrb[0].mxu0
      %v986 = vadd.f32 %v282, %v985
      %v987 = vpop.f32.mrb[0].mxu0
      %v988 = vpop.f32.mrb[0].mxu0
      %v989 = vadd.f32 %v282, %v988
      %v990 = vpop.f32.mrb[0].mxu0
      %991 = vmatprep.mubr.bf16.mxu0 0
      %992 = vmatmul.mubr.bf16.gmra.mrb[0].mxu0 %v641
      %v993 = vpop.f32.mrb[0].mxu0
      %v994 = vadd.f32 %v282, %v993
      %v995 = vpop.f32.mrb[0].mxu0
      %v996 = vpop.f32.mrb[0].mxu0
      %v997 = vadd.f32 %v282, %v996
      %v998 = vpop.f32.mrb[0].mxu0
      %999 = vmatprep.mubr.bf16.mxu0 0
      %1000 = vmatmul.mubr.bf16.gmra.mrb[0].mxu0 %v644
      %v1001 = vpop.f32.mrb[0].mxu0
      %v1002 = vadd.f32 %v282, %v1001
      %v1003 = vpop.f32.mrb[0].mxu0
      %v1004 = vpop.f32.mrb[0].mxu0
      %v1005 = vadd.f32 %v282, %v1004
      %v1006 = vpop.f32.mrb[0].mxu0
      %1007 = vmatprep.mubr.bf16.mxu0 0
      %1008 = vmatmul.mubr.bf16.gmra.mrb[0].mxu0 %v647
      %v1009 = vpop.f32.mrb[0].mxu0
      %v1010 = vadd.f32 %v282, %v1009
      %v1011 = vpop.f32.mrb[0].mxu0
      %v1012 = vpop.f32.mrb[0].mxu0
      %v1013 = vadd.f32 %v282, %v1012
      %v1014 = vpop.f32.mrb[0].mxu0
      %1015 = vmatprep.mubr.bf16.mxu0 0
      %1016 = vmatmul.mubr.bf16.gmra.mrb[0].mxu0 %v650
      %v1017 = vpop.f32.mrb[0].mxu0
      %v1018 = vadd.f32 %v282, %v1017
      %v1019 = vpop.f32.mrb[0].mxu0
      %v1020 = vpop.f32.mrb[0].mxu0
      %v1021 = vadd.f32 %v282, %v1020
      %v1022 = vpop.f32.mrb[0].mxu0
      %1023 = vmatprep.mubr.bf16.mxu0 0
      %1024 = vmatmul.mubr.bf16.gmra.mrb[0].mxu0 %v653
      %v1025 = vpop.f32.mrb[0].mxu0
      %v1026 = vadd.f32 %v282, %v1025
      %v1027 = vpop.f32.mrb[0].mxu0
      %v1028 = vpop.f32.mrb[0].mxu0
      %v1029 = vadd.f32 %v282, %v1028
      %v1030 = vpop.f32.mrb[0].mxu0
      %1031 = vmatprep.mubr.bf16.mxu0 0
      %1032 = vmatmul.mubr.bf16.gmra.mrb[0].mxu0 %v656
      %v1033 = vpop.f32.mrb[0].mxu0
      %v1034 = vadd.f32 %v282, %v1033
      %v1035 = vpop.f32.mrb[0].mxu0
      %v1036 = vpop.f32.mrb[0].mxu0
      %v1037 = vadd.f32 %v282, %v1036
      %v1038 = vpop.f32.mrb[0].mxu0
      %1039 = vmatprep.mubr.bf16.mxu0 0
      %1040 = vmatmul.mubr.bf16.gmra.mrb[0].mxu0 %v659
      %v1041 = vpop.f32.mrb[0].mxu0
      %v1042 = vadd.f32 %v282, %v1041
      %v1043 = vpop.f32.mrb[0].mxu0
      %v1044 = vpop.f32.mrb[0].mxu0
      %v1045 = vadd.f32 %v282, %v1044
      %v1046 = vpop.f32.mrb[0].mxu0
      %1047 = vmatprep.mubr.bf16.mxu0 0
      %1048 = vmatmul.mubr.bf16.gmra.mrb[0].mxu0 %v662
      %v1049 = vpop.f32.mrb[0].mxu0
      %v1050 = vadd.f32 %v282, %v1049
      %v1051 = vpop.f32.mrb[0].mxu0
      %v1052 = vpop.f32.mrb[0].mxu0
      %v1053 = vadd.f32 %v282, %v1052
      %v1054 = vpop.f32.mrb[0].mxu0
      %1055 = vmatprep.mubr.bf16.mxu0 0
      %1056 = vmatmul.mubr.bf16.gmra.mrb[0].mxu0 %v665
      %v1057 = vpop.f32.mrb[0].mxu0
      %v1058 = vadd.f32 %v282, %v1057
      %v1059 = vpop.f32.mrb[0].mxu0
      %v1060 = vpop.f32.mrb[0].mxu0
      %v1061 = vadd.f32 %v282, %v1060
      %v1062 = vpop.f32.mrb[0].mxu0
      %1063 = vmatprep.mubr.bf16.mxu0 0
      %1064 = vmatmul.mubr.bf16.gmra.mrb[0].mxu0 %v668
      %v1065 = vpop.f32.mrb[0].mxu0
      %v1066 = vadd.f32 %v282, %v1065
      %v1067 = vpop.f32.mrb[0].mxu0
      %v1068 = vpop.f32.mrb[0].mxu0
      %v1069 = vadd.f32 %v282, %v1068
      %v1070 = vpop.f32.mrb[0].mxu0
      %1071 = vmatprep.mubr.bf16.mxu0 0
      %1072 = vmatmul.mubr.bf16.gmra.mrb[0].mxu0 %v671
      %v1073 = vpop.f32.mrb[0].mxu0
      %v1074 = vadd.f32 %v282, %v1073
      %v1075 = vpop.f32.mrb[0].mxu0
      %v1076 = vpop.f32.mrb[0].mxu0
      %v1077 = vadd.f32 %v282, %v1076
      %v1078 = vpop.f32.mrb[0].mxu0
      %1079 = vmatprep.mubr.bf16.mxu0 0
      %1080 = vmatmul.mubr.bf16.gmra.mrb[0].mxu0 %v674
      %v1081 = vpop.f32.mrb[0].mxu0
      %v1082 = vadd.f32 %v282, %v1081
      %v1083 = vpop.f32.mrb[0].mxu0
      %v1084 = vpop.f32.mrb[0].mxu0
      %v1085 = vadd.f32 %v282, %v1084
      %v1086 = vpop.f32.mrb[0].mxu0
      %1087 = vmatprep.mubr.bf16.mxu0 0
      %1088 = vmatmul.mubr.bf16.gmra.mrb[0].mxu0 %v677
      %v1089 = vpop.f32.mrb[0].mxu0
      %v1090 = vadd.f32 %v282, %v1089
      %v1091 = vpop.f32.mrb[0].mxu0
      %v1092 = vpop.f32.mrb[0].mxu0
      %v1093 = vadd.f32 %v282, %v1092
      %v1094 = vpop.f32.mrb[0].mxu0
      %1095 = vmatprep.mubr.bf16.mxu0 0
      %1096 = vmatmul.mubr.bf16.gmra.mrb[0].mxu0 %v680
      %v1097 = vpop.f32.mrb[0].mxu0
      %v1098 = vadd.f32 %v282, %v1097
      %v1099 = vpop.f32.mrb[0].mxu0
      %v1100 = vpop.f32.mrb[0].mxu0
      %v1101 = vadd.f32 %v282, %v1100
      %v1102 = vpop.f32.mrb[0].mxu0
      %1103 = vmatprep.mubr.bf16.mxu0 0
      %1104 = vmatmul.mubr.bf16.gmra.mrb[0].mxu0 %v683
      %v1105 = vpop.f32.mrb[0].mxu0
      %v1106 = vadd.f32 %v282, %v1105
      %v1107 = vpop.f32.mrb[0].mxu0
      %v1108 = vpop.f32.mrb[0].mxu0
      %v1109 = vadd.f32 %v282, %v1108
      %v1110 = vpop.f32.mrb[0].mxu0
      %1111 = vmatprep.mubr.bf16.mxu0 0
      %1112 = vmatmul.mubr.bf16.gmra.mrb[0].mxu0 %v686
      %v1113 = vpop.f32.mrb[0].mxu0
      %v1114 = vadd.f32 %v282, %v1113
      %v1115 = vpop.f32.mrb[0].mxu0
      %v1116 = vpop.f32.mrb[0].mxu0
      %v1117 = vadd.f32 %v282, %v1116
      %v1118 = vpop.f32.mrb[0].mxu0
      %1119 = vdwg.mxu0
      %v1120 = vmax.f32 %v730, 0.0
      %v1121 = vmax.f32 %v733, 0.0
      %v1122 = vmax.f32 %v738, 0.0
      %v1123 = vmax.f32 %v741, 0.0
      %v1124 = vmax.f32 %v746, 0.0
      %v1125 = vmax.f32 %v749, 0.0
      %v1126 = vmax.f32 %v754, 0.0
      %v1127 = vmax.f32 %v757, 0.0
      %v1128 = vmax.f32 %v762, 0.0
      %v1129 = vmax.f32 %v765, 0.0
      %v1130 = vmax.f32 %v770, 0.0
      %v1131 = vmax.f32 %v773, 0.0
      %v1132 = vmax.f32 %v778, 0.0
      %v1133 = vmax.f32 %v781, 0.0
      %v1134 = vmax.f32 %v786, 0.0
      %v1135 = vmax.f32 %v789, 0.0
      %v1136 = vmax.f32 %v794, 0.0
      %v1137 = vmax.f32 %v797, 0.0
      %v1138 = vmax.f32 %v802, 0.0
      %v1139 = vmax.f32 %v805, 0.0
      %v1140 = vmax.f32 %v810, 0.0
      %v1141 = vmax.f32 %v813, 0.0
      %v1142 = vmax.f32 %v818, 0.0
      %v1143 = vmax.f32 %v821, 0.0
      %v1144 = vmax.f32 %v826, 0.0
      %v1145 = vmax.f32 %v829, 0.0
      %v1146 = vmax.f32 %v834, 0.0
      %v1147 = vmax.f32 %v837, 0.0
      %v1148 = vmax.f32 %v842, 0.0
      %v1149 = vmax.f32 %v845, 0.0
      %v1150 = vmax.f32 %v850, 0.0
      %v1151 = vmax.f32 %v853, 0.0
      %v1152 = vmax.f32 %v858, 0.0
      %v1153 = vmax.f32 %v861, 0.0
      %v1154 = vmax.f32 %v866, 0.0
      %v1155 = vmax.f32 %v869, 0.0
      %v1156 = vmax.f32 %v874, 0.0
      %v1157 = vmax.f32 %v877, 0.0
      %v1158 = vmax.f32 %v882, 0.0
      %v1159 = vmax.f32 %v885, 0.0
      %v1160 = vmax.f32 %v890, 0.0
      %v1161 = vmax.f32 %v893, 0.0
      %v1162 = vmax.f32 %v898, 0.0
      %v1163 = vmax.f32 %v901, 0.0
      %v1164 = vmax.f32 %v906, 0.0
      %v1165 = vmax.f32 %v909, 0.0
      %v1166 = vmax.f32 %v914, 0.0
      %v1167 = vmax.f32 %v917, 0.0
      %v1168 = vmax.f32 %v922, 0.0
      %v1169 = vmax.f32 %v925, 0.0
      %v1170 = vmax.f32 %v930, 0.0
      %v1171 = vmax.f32 %v933, 0.0
      %v1172 = vmax.f32 %v938, 0.0
      %v1173 = vmax.f32 %v941, 0.0
      %v1174 = vmax.f32 %v946, 0.0
      %v1175 = vmax.f32 %v949, 0.0
      %v1176 = vmax.f32 %v954, 0.0
      %v1177 = vmax.f32 %v957, 0.0
      %v1178 = vmax.f32 %v962, 0.0
      %v1179 = vmax.f32 %v965, 0.0
      %v1180 = vmax.f32 %v970, 0.0
      %v1181 = vmax.f32 %v973, 0.0
      %v1182 = vmax.f32 %v978, 0.0
      %v1183 = vmax.f32 %v981, 0.0
      %v1184 = vmax.f32 %v986, 0.0
      %v1185 = vmax.f32 %v989, 0.0
      %v1186 = vmax.f32 %v994, 0.0
      %v1187 = vmax.f32 %v997, 0.0
      %v1188 = vmax.f32 %v1002, 0.0
      %v1189 = vmax.f32 %v1005, 0.0
      %v1190 = vmax.f32 %v1010, 0.0
      %v1191 = vmax.f32 %v1013, 0.0
      %v1192 = vmax.f32 %v1018, 0.0
      %v1193 = vmax.f32 %v1021, 0.0
      %v1194 = vmax.f32 %v1026, 0.0
      %v1195 = vmax.f32 %v1029, 0.0
      %v1196 = vmax.f32 %v1034, 0.0
      %v1197 = vmax.f32 %v1037, 0.0
      %v1198 = vmax.f32 %v1042, 0.0
      %v1199 = vmax.f32 %v1045, 0.0
      %v1200 = vmax.f32 %v1050, 0.0
      %v1201 = vmax.f32 %v1053, 0.0
      %v1202 = vmax.f32 %v1058, 0.0
      %v1203 = vmax.f32 %v1061, 0.0
      %v1204 = vmax.f32 %v1066, 0.0
      %v1205 = vmax.f32 %v1069, 0.0
      %v1206 = vmax.f32 %v1074, 0.0
      %v1207 = vmax.f32 %v1077, 0.0
      %v1208 = vmax.f32 %v1082, 0.0
      %v1209 = vmax.f32 %v1085, 0.0
      %v1210 = vmax.f32 %v1090, 0.0
      %v1211 = vmax.f32 %v1093, 0.0
      %v1212 = vmax.f32 %v1098, 0.0
      %v1213 = vmax.f32 %v1101, 0.0
      %v1214 = vmax.f32 %v1106, 0.0
      %v1215 = vmax.f32 %v1109, 0.0
      %v1216 = vmax.f32 %v1114, 0.0
      %v1217 = vmax.f32 %v1117, 0.0
      %v1218 = vpack.c.bf16 %v1121, %v1120
      %v1219 = vpack.c.bf16 %v1123, %v1122
      %v1220 = vpack.c.bf16 %v1125, %v1124
      %v1221 = vpack.c.bf16 %v1127, %v1126
      %v1222 = vpack.c.bf16 %v1129, %v1128
      %v1223 = vpack.c.bf16 %v1131, %v1130
      %v1224 = vpack.c.bf16 %v1133, %v1132
      %v1225 = vpack.c.bf16 %v1135, %v1134
      %v1226 = vpack.c.bf16 %v1137, %v1136
      %v1227 = vpack.c.bf16 %v1139, %v1138
      %v1228 = vpack.c.bf16 %v1141, %v1140
      %v1229 = vpack.c.bf16 %v1143, %v1142
      %v1230 = vpack.c.bf16 %v1145, %v1144
      %v1231 = vpack.c.bf16 %v1147, %v1146
      %v1232 = vpack.c.bf16 %v1149, %v1148
      %v1233 = vpack.c.bf16 %v1151, %v1150
      %v1234 = vpack.c.bf16 %v1153, %v1152
      %v1235 = vpack.c.bf16 %v1155, %v1154
      %v1236 = vpack.c.bf16 %v1157, %v1156
      %v1237 = vpack.c.bf16 %v1159, %v1158
      %v1238 = vpack.c.bf16 %v1161, %v1160
      %v1239 = vpack.c.bf16 %v1163, %v1162
      %v1240 = vpack.c.bf16 %v1165, %v1164
      %v1241 = vpack.c.bf16 %v1167, %v1166
      %v1242 = vpack.c.bf16 %v1169, %v1168
      %v1243 = vpack.c.bf16 %v1171, %v1170
      %v1244 = vpack.c.bf16 %v1173, %v1172
      %v1245 = vpack.c.bf16 %v1175, %v1174
      %v1246 = vpack.c.bf16 %v1177, %v1176
      %v1247 = vpack.c.bf16 %v1179, %v1178
      %v1248 = vpack.c.bf16 %v1181, %v1180
      %v1249 = vpack.c.bf16 %v1183, %v1182
      %v1250 = vpack.c.bf16 %v1185, %v1184
      %v1251 = vpack.c.bf16 %v1187, %v1186
      %v1252 = vpack.c.bf16 %v1189, %v1188
      %v1253 = vpack.c.bf16 %v1191, %v1190
      %v1254 = vpack.c.bf16 %v1193, %v1192
      %v1255 = vpack.c.bf16 %v1195, %v1194
      %v1256 = vpack.c.bf16 %v1197, %v1196
      %v1257 = vpack.c.bf16 %v1199, %v1198
      %v1258 = vpack.c.bf16 %v1201, %v1200
      %v1259 = vpack.c.bf16 %v1203, %v1202
      %v1260 = vpack.c.bf16 %v1205, %v1204
      %v1261 = vpack.c.bf16 %v1207, %v1206
      %v1262 = vpack.c.bf16 %v1209, %v1208
      %v1263 = vpack.c.bf16 %v1211, %v1210
      %v1264 = vpack.c.bf16 %v1213, %v1212
      %v1265 = vpack.c.bf16 %v1215, %v1214
      %v1266 = vpack.c.bf16 %v1217, %v1216
      %v1316 = vunpack.c.l.b16 %v1218
      %v1317 = vunpack.c.h.b16 %v1218
      %v1318 = vunpack.c.l.b16 %v1219
      %v1319 = vunpack.c.h.b16 %v1219
      %v1320 = vunpack.c.l.b16 %v1220
      %v1321 = vunpack.c.h.b16 %v1220
      %v1322 = vunpack.c.l.b16 %v1221
      %v1323 = vunpack.c.h.b16 %v1221
      %v1324 = vunpack.c.l.b16 %v1222
      %v1325 = vunpack.c.h.b16 %v1222
      %v1326 = vunpack.c.l.b16 %v1223
      %v1327 = vunpack.c.h.b16 %v1223
      %v1328 = vunpack.c.l.b16 %v1224
      %v1329 = vunpack.c.h.b16 %v1224
      %v1330 = vunpack.c.l.b16 %v1225
      %v1331 = vunpack.c.h.b16 %v1225
      %v1332 = vunpack.c.l.b16 %v1226
      %v1333 = vunpack.c.h.b16 %v1226
      %v1334 = vunpack.c.l.b16 %v1227
      %v1335 = vunpack.c.h.b16 %v1227
      %v1336 = vunpack.c.l.b16 %v1228
      %v1337 = vunpack.c.h.b16 %v1228
      %v1338 = vunpack.c.l.b16 %v1229
      %v1339 = vunpack.c.h.b16 %v1229
      %v1340 = vunpack.c.l.b16 %v1230
      %v1341 = vunpack.c.h.b16 %v1230
      %v1342 = vunpack.c.l.b16 %v1231
      %v1343 = vunpack.c.h.b16 %v1231
      %v1344 = vunpack.c.l.b16 %v1232
      %v1345 = vunpack.c.h.b16 %v1232
      %v1346 = vunpack.c.l.b16 %v1233
      %v1347 = vunpack.c.h.b16 %v1233
      %v1348 = vunpack.c.l.b16 %v1234
      %v1349 = vunpack.c.h.b16 %v1234
      %v1350 = vunpack.c.l.b16 %v1235
      %v1351 = vunpack.c.h.b16 %v1235
      %v1352 = vunpack.c.l.b16 %v1236
      %v1353 = vunpack.c.h.b16 %v1236
      %v1354 = vunpack.c.l.b16 %v1237
      %v1355 = vunpack.c.h.b16 %v1237
      %v1356 = vunpack.c.l.b16 %v1238
      %v1357 = vunpack.c.h.b16 %v1238
      %v1358 = vunpack.c.l.b16 %v1239
      %v1359 = vunpack.c.h.b16 %v1239
      %v1360 = vunpack.c.l.b16 %v1240
      %v1361 = vunpack.c.h.b16 %v1240
      %v1362 = vunpack.c.l.b16 %v1241
      %v1363 = vunpack.c.h.b16 %v1241
      %v1364 = vunpack.c.l.b16 %v1242
      %v1365 = vunpack.c.h.b16 %v1242
      %v1366 = vunpack.c.l.b16 %v1243
      %v1367 = vunpack.c.h.b16 %v1243
      %v1368 = vunpack.c.l.b16 %v1244
      %v1369 = vunpack.c.h.b16 %v1244
      %v1370 = vunpack.c.l.b16 %v1245
      %v1371 = vunpack.c.h.b16 %v1245
      %v1372 = vunpack.c.l.b16 %v1246
      %v1373 = vunpack.c.h.b16 %v1246
      %v1374 = vunpack.c.l.b16 %v1247
      %v1375 = vunpack.c.h.b16 %v1247
      %v1376 = vunpack.c.l.b16 %v1248
      %v1377 = vunpack.c.h.b16 %v1248
      %v1378 = vunpack.c.l.b16 %v1249
      %v1379 = vunpack.c.h.b16 %v1249
      %v1380 = vunpack.c.l.b16 %v1250
      %v1381 = vunpack.c.h.b16 %v1250
      %v1382 = vunpack.c.l.b16 %v1251
      %v1383 = vunpack.c.h.b16 %v1251
      %v1384 = vunpack.c.l.b16 %v1252
      %v1385 = vunpack.c.h.b16 %v1252
      %v1386 = vunpack.c.l.b16 %v1253
      %v1387 = vunpack.c.h.b16 %v1253
      %v1388 = vunpack.c.l.b16 %v1254
      %v1389 = vunpack.c.h.b16 %v1254
      %v1390 = vunpack.c.l.b16 %v1255
      %v1391 = vunpack.c.h.b16 %v1255
      %v1392 = vunpack.c.l.b16 %v1256
      %v1393 = vunpack.c.h.b16 %v1256
      %v1394 = vunpack.c.l.b16 %v1257
      %v1395 = vunpack.c.h.b16 %v1257
      %v1396 = vunpack.c.l.b16 %v1258
      %v1397 = vunpack.c.h.b16 %v1258
      %v1398 = vunpack.c.l.b16 %v1259
      %v1399 = vunpack.c.h.b16 %v1259
      %v1400 = vunpack.c.l.b16 %v1260
      %v1401 = vunpack.c.h.b16 %v1260
      %v1402 = vunpack.c.l.b16 %v1261
      %v1403 = vunpack.c.h.b16 %v1261
      %v1404 = vunpack.c.l.b16 %v1262
      %v1405 = vunpack.c.h.b16 %v1262
      %v1406 = vunpack.c.l.b16 %v1263
      %v1407 = vunpack.c.h.b16 %v1263
      %v1408 = vunpack.c.l.b16 %v1264
      %v1409 = vunpack.c.h.b16 %v1264
      %v1410 = vunpack.c.l.b16 %v1265
      %v1411 = vunpack.c.h.b16 %v1265
      %v1412 = vunpack.c.l.b16 %v1266
      %v1413 = vunpack.c.h.b16 %v1266
      %v1414 = vpack.c.b16 %v1316, %v1316
      %v1415 = vpack.c.b16 %v1317, %v1317
      %v1416 = vpack.c.b16 %v1318, %v1318
      %v1417 = vpack.c.b16 %v1319, %v1319
      %v1418 = vpack.c.b16 %v1320, %v1320
      %v1419 = vpack.c.b16 %v1321, %v1321
      %v1420 = vpack.c.b16 %v1322, %v1322
      %v1421 = vpack.c.b16 %v1323, %v1323
      %v1422 = vpack.c.b16 %v1324, %v1324
      %v1423 = vpack.c.b16 %v1325, %v1325
      %v1424 = vpack.c.b16 %v1326, %v1326
      %v1425 = vpack.c.b16 %v1327, %v1327
      %v1426 = vpack.c.b16 %v1328, %v1328
      %v1427 = vpack.c.b16 %v1329, %v1329
      %v1428 = vpack.c.b16 %v1330, %v1330
      %v1429 = vpack.c.b16 %v1331, %v1331
      %v1430 = vpack.c.b16 %v1332, %v1332
      %v1431 = vpack.c.b16 %v1333, %v1333
      %v1432 = vpack.c.b16 %v1334, %v1334
      %v1433 = vpack.c.b16 %v1335, %v1335
      %v1434 = vpack.c.b16 %v1336, %v1336
      %v1435 = vpack.c.b16 %v1337, %v1337
      %v1436 = vpack.c.b16 %v1338, %v1338
      %v1437 = vpack.c.b16 %v1339, %v1339
      %v1438 = vpack.c.b16 %v1340, %v1340
      %v1439 = vpack.c.b16 %v1341, %v1341
      %v1440 = vpack.c.b16 %v1342, %v1342
      %v1441 = vpack.c.b16 %v1343, %v1343
      %v1442 = vpack.c.b16 %v1344, %v1344
      %v1443 = vpack.c.b16 %v1345, %v1345
      %v1444 = vpack.c.b16 %v1346, %v1346
      %v1445 = vpack.c.b16 %v1347, %v1347
      %v1446 = vpack.c.b16 %v1348, %v1348
      %v1447 = vpack.c.b16 %v1349, %v1349
      %v1448 = vpack.c.b16 %v1350, %v1350
      %v1449 = vpack.c.b16 %v1351, %v1351
      %v1450 = vpack.c.b16 %v1352, %v1352
      %v1451 = vpack.c.b16 %v1353, %v1353
      %v1452 = vpack.c.b16 %v1354, %v1354
      %v1453 = vpack.c.b16 %v1355, %v1355
      %v1454 = vpack.c.b16 %v1356, %v1356
      %v1455 = vpack.c.b16 %v1357, %v1357
      %v1456 = vpack.c.b16 %v1358, %v1358
      %v1457 = vpack.c.b16 %v1359, %v1359
      %v1458 = vpack.c.b16 %v1360, %v1360
      %v1459 = vpack.c.b16 %v1361, %v1361
      %v1460 = vpack.c.b16 %v1362, %v1362
      %v1461 = vpack.c.b16 %v1363, %v1363
      %v1462 = vpack.c.b16 %v1364, %v1364
      %v1463 = vpack.c.b16 %v1365, %v1365
      %v1464 = vpack.c.b16 %v1366, %v1366
      %v1465 = vpack.c.b16 %v1367, %v1367
      %v1466 = vpack.c.b16 %v1368, %v1368
      %v1467 = vpack.c.b16 %v1369, %v1369
      %v1468 = vpack.c.b16 %v1370, %v1370
      %v1469 = vpack.c.b16 %v1371, %v1371
      %v1470 = vpack.c.b16 %v1372, %v1372
      %v1471 = vpack.c.b16 %v1373, %v1373
      %v1472 = vpack.c.b16 %v1374, %v1374
      %v1473 = vpack.c.b16 %v1375, %v1375
      %v1474 = vpack.c.b16 %v1376, %v1376
      %v1475 = vpack.c.b16 %v1377, %v1377
      %v1476 = vpack.c.b16 %v1378, %v1378
      %v1477 = vpack.c.b16 %v1379, %v1379
      %v1478 = vpack.c.b16 %v1380, %v1380
      %v1479 = vpack.c.b16 %v1381, %v1381
      %v1480 = vpack.c.b16 %v1382, %v1382
      %v1481 = vpack.c.b16 %v1383, %v1383
      %v1482 = vpack.c.b16 %v1384, %v1384
      %v1483 = vpack.c.b16 %v1385, %v1385
      %v1484 = vpack.c.b16 %v1386, %v1386
      %v1485 = vpack.c.b16 %v1387, %v1387
      %v1486 = vpack.c.b16 %v1388, %v1388
      %v1487 = vpack.c.b16 %v1389, %v1389
      %v1488 = vpack.c.b16 %v1390, %v1390
      %v1489 = vpack.c.b16 %v1391, %v1391
      %v1490 = vpack.c.b16 %v1392, %v1392
      %v1491 = vpack.c.b16 %v1393, %v1393
      %v1492 = vpack.c.b16 %v1394, %v1394
      %v1493 = vpack.c.b16 %v1395, %v1395
      %v1494 = vpack.c.b16 %v1396, %v1396
      %v1495 = vpack.c.b16 %v1397, %v1397
      %v1496 = vpack.c.b16 %v1398, %v1398
      %v1497 = vpack.c.b16 %v1399, %v1399
      %v1498 = vpack.c.b16 %v1400, %v1400
      %v1499 = vpack.c.b16 %v1401, %v1401
      %v1500 = vpack.c.b16 %v1402, %v1402
      %v1501 = vpack.c.b16 %v1403, %v1403
      %v1502 = vpack.c.b16 %v1404, %v1404
      %v1503 = vpack.c.b16 %v1405, %v1405
      %v1504 = vpack.c.b16 %v1406, %v1406
      %v1505 = vpack.c.b16 %v1407, %v1407
      %v1506 = vpack.c.b16 %v1408, %v1408
      %v1507 = vpack.c.b16 %v1409, %v1409
      %v1508 = vpack.c.b16 %v1410, %v1410
      %v1509 = vpack.c.b16 %v1411, %v1411
      %v1510 = vpack.c.b16 %v1412, %v1412
      %v1511 = vpack.c.b16 %v1413, %v1413
      %vm1610 = vcmask 125952
      %1611 = vst.msk [vmem:[%s172] sm:$0xf] %vm1610, %v1414
      %1612 = vst.msk [vmem:[%s172 + $0x4] sm:$0xf] %vm1610, %v1415
      %1613 = vst.msk [vmem:[%s172 + $0x8] sm:$0xf] %vm1610, %v1416
      %1614 = vst.msk [vmem:[%s172 + $0xc] sm:$0xf] %vm1610, %v1417
      %1615 = vst.msk [vmem:[%s172 + $0x10] sm:$0xf] %vm1610, %v1418
      %1616 = vst.msk [vmem:[%s172 + $0x14] sm:$0xf] %vm1610, %v1419
      %1617 = vst.msk [vmem:[%s172 + $0x18] sm:$0xf] %vm1610, %v1420
      %1618 = vst.msk [vmem:[%s172 + $0x1c] sm:$0xf] %vm1610, %v1421
      %1619 = vst.msk [vmem:[%s172 + $0x20] sm:$0xf] %vm1610, %v1422
      %1620 = vst.msk [vmem:[%s172 + $0x24] sm:$0xf] %vm1610, %v1423
      %1621 = vst.msk [vmem:[%s172 + $0x28] sm:$0xf] %vm1610, %v1424
      %1622 = vst.msk [vmem:[%s172 + $0x2c] sm:$0xf] %vm1610, %v1425
      %1623 = vst.msk [vmem:[%s172 + $0x30] sm:$0xf] %vm1610, %v1426
      %1624 = vst.msk [vmem:[%s172 + $0x34] sm:$0xf] %vm1610, %v1427
      %1625 = vst.msk [vmem:[%s172 + $0x38] sm:$0xf] %vm1610, %v1428
      %1626 = vst.msk [vmem:[%s172 + $0x3c] sm:$0xf] %vm1610, %v1429
      %1627 = vst.msk [vmem:[%s172 + $0x40] sm:$0xf] %vm1610, %v1430
      %1628 = vst.msk [vmem:[%s172 + $0x44] sm:$0xf] %vm1610, %v1431
      %1629 = vst.msk [vmem:[%s172 + $0x48] sm:$0xf] %vm1610, %v1432
      %1630 = vst.msk [vmem:[%s172 + $0x4c] sm:$0xf] %vm1610, %v1433
      %1631 = vst.msk [vmem:[%s172 + $0x50] sm:$0xf] %vm1610, %v1434
      %1632 = vst.msk [vmem:[%s172 + $0x54] sm:$0xf] %vm1610, %v1435
      %1633 = vst.msk [vmem:[%s172 + $0x58] sm:$0xf] %vm1610, %v1436
      %1634 = vst.msk [vmem:[%s172 + $0x5c] sm:$0xf] %vm1610, %v1437
      %1635 = vst.msk [vmem:[%s172 + $0x60] sm:$0xf] %vm1610, %v1438
      %1636 = vst.msk [vmem:[%s172 + $0x64] sm:$0xf] %vm1610, %v1439
      %1637 = vst.msk [vmem:[%s172 + $0x68] sm:$0xf] %vm1610, %v1440
      %1638 = vst.msk [vmem:[%s172 + $0x6c] sm:$0xf] %vm1610, %v1441
      %1639 = vst.msk [vmem:[%s172 + $0x70] sm:$0xf] %vm1610, %v1442
      %1640 = vst.msk [vmem:[%s172 + $0x74] sm:$0xf] %vm1610, %v1443
      %1641 = vst.msk [vmem:[%s172 + $0x78] sm:$0xf] %vm1610, %v1444
      %1642 = vst.msk [vmem:[%s172 + $0x7c] sm:$0xf] %vm1610, %v1445
      %1643 = vst.msk [vmem:[%s172 + $0x80] sm:$0xf] %vm1610, %v1446
      %1644 = vst.msk [vmem:[%s172 + $0x84] sm:$0xf] %vm1610, %v1447
      %1645 = vst.msk [vmem:[%s172 + $0x88] sm:$0xf] %vm1610, %v1448
      %1646 = vst.msk [vmem:[%s172 + $0x8c] sm:$0xf] %vm1610, %v1449
      %1647 = vst.msk [vmem:[%s172 + $0x90] sm:$0xf] %vm1610, %v1450
      %1648 = vst.msk [vmem:[%s172 + $0x94] sm:$0xf] %vm1610, %v1451
      %1649 = vst.msk [vmem:[%s172 + $0x98] sm:$0xf] %vm1610, %v1452
      %1650 = vst.msk [vmem:[%s172 + $0x9c] sm:$0xf] %vm1610, %v1453
      %1651 = vst.msk [vmem:[%s172 + $0xa0] sm:$0xf] %vm1610, %v1454
      %1652 = vst.msk [vmem:[%s172 + $0xa4] sm:$0xf] %vm1610, %v1455
      %1653 = vst.msk [vmem:[%s172 + $0xa8] sm:$0xf] %vm1610, %v1456
      %1654 = vst.msk [vmem:[%s172 + $0xac] sm:$0xf] %vm1610, %v1457
      %1655 = vst.msk [vmem:[%s172 + $0xb0] sm:$0xf] %vm1610, %v1458
      %1656 = vst.msk [vmem:[%s172 + $0xb4] sm:$0xf] %vm1610, %v1459
      %1657 = vst.msk [vmem:[%s172 + $0xb8] sm:$0xf] %vm1610, %v1460
      %1658 = vst.msk [vmem:[%s172 + $0xbc] sm:$0xf] %vm1610, %v1461
      %1659 = vst.msk [vmem:[%s172 + $0xc0] sm:$0xf] %vm1610, %v1462
      %1660 = vst.msk [vmem:[%s172 + $0xc4] sm:$0xf] %vm1610, %v1463
      %1661 = vst.msk [vmem:[%s172 + $0xc8] sm:$0xf] %vm1610, %v1464
      %1662 = vst.msk [vmem:[%s172 + $0xcc] sm:$0xf] %vm1610, %v1465
      %1663 = vst.msk [vmem:[%s172 + $0xd0] sm:$0xf] %vm1610, %v1466
      %1664 = vst.msk [vmem:[%s172 + $0xd4] sm:$0xf] %vm1610, %v1467
      %1665 = vst.msk [vmem:[%s172 + $0xd8] sm:$0xf] %vm1610, %v1468
      %1666 = vst.msk [vmem:[%s172 + $0xdc] sm:$0xf] %vm1610, %v1469
      %1667 = vst.msk [vmem:[%s172 + $0xe0] sm:$0xf] %vm1610, %v1470
      %1668 = vst.msk [vmem:[%s172 + $0xe4] sm:$0xf] %vm1610, %v1471
      %1669 = vst.msk [vmem:[%s172 + $0xe8] sm:$0xf] %vm1610, %v1472
      %1670 = vst.msk [vmem:[%s172 + $0xec] sm:$0xf] %vm1610, %v1473
      %1671 = vst.msk [vmem:[%s172 + $0xf0] sm:$0xf] %vm1610, %v1474
      %1672 = vst.msk [vmem:[%s172 + $0xf4] sm:$0xf] %vm1610, %v1475
      %1673 = vst.msk [vmem:[%s172 + $0xf8] sm:$0xf] %vm1610, %v1476
      %1674 = vst.msk [vmem:[%s172 + $0xfc] sm:$0xf] %vm1610, %v1477
      %1675 = vst.msk [vmem:[%s172 + $0x100] sm:$0xf] %vm1610, %v1478
      %1676 = vst.msk [vmem:[%s172 + $0x104] sm:$0xf] %vm1610, %v1479
      %1677 = vst.msk [vmem:[%s172 + $0x108] sm:$0xf] %vm1610, %v1480
      %1678 = vst.msk [vmem:[%s172 + $0x10c] sm:$0xf] %vm1610, %v1481
      %1679 = vst.msk [vmem:[%s172 + $0x110] sm:$0xf] %vm1610, %v1482
      %1680 = vst.msk [vmem:[%s172 + $0x114] sm:$0xf] %vm1610, %v1483
      %1681 = vst.msk [vmem:[%s172 + $0x118] sm:$0xf] %vm1610, %v1484
      %1682 = vst.msk [vmem:[%s172 + $0x11c] sm:$0xf] %vm1610, %v1485
      %1683 = vst.msk [vmem:[%s172 + $0x120] sm:$0xf] %vm1610, %v1486
      %1684 = vst.msk [vmem:[%s172 + $0x124] sm:$0xf] %vm1610, %v1487
      %1685 = vst.msk [vmem:[%s172 + $0x128] sm:$0xf] %vm1610, %v1488
      %1686 = vst.msk [vmem:[%s172 + $0x12c] sm:$0xf] %vm1610, %v1489
      %1687 = vst.msk [vmem:[%s172 + $0x130] sm:$0xf] %vm1610, %v1490
      %1688 = vst.msk [vmem:[%s172 + $0x134] sm:$0xf] %vm1610, %v1491
      %1689 = vst.msk [vmem:[%s172 + $0x138] sm:$0xf] %vm1610, %v1492
      %1690 = vst.msk [vmem:[%s172 + $0x13c] sm:$0xf] %vm1610, %v1493
      %1691 = vst.msk [vmem:[%s172 + $0x140] sm:$0xf] %vm1610, %v1494
      %1692 = vst.msk [vmem:[%s172 + $0x144] sm:$0xf] %vm1610, %v1495
      %1693 = vst.msk [vmem:[%s172 + $0x148] sm:$0xf] %vm1610, %v1496
      %1694 = vst.msk [vmem:[%s172 + $0x14c] sm:$0xf] %vm1610, %v1497
      %1695 = vst.msk [vmem:[%s172 + $0x150] sm:$0xf] %vm1610, %v1498
      %1696 = vst.msk [vmem:[%s172 + $0x154] sm:$0xf] %vm1610, %v1499
      %1697 = vst.msk [vmem:[%s172 + $0x158] sm:$0xf] %vm1610, %v1500
      %1698 = vst.msk [vmem:[%s172 + $0x15c] sm:$0xf] %vm1610, %v1501
      %1699 = vst.msk [vmem:[%s172 + $0x160] sm:$0xf] %vm1610, %v1502
      %1700 = vst.msk [vmem:[%s172 + $0x164] sm:$0xf] %vm1610, %v1503
      %1701 = vst.msk [vmem:[%s172 + $0x168] sm:$0xf] %vm1610, %v1504
      %1702 = vst.msk [vmem:[%s172 + $0x16c] sm:$0xf] %vm1610, %v1505
      %1703 = vst.msk [vmem:[%s172 + $0x170] sm:$0xf] %vm1610, %v1506
      %1704 = vst.msk [vmem:[%s172 + $0x174] sm:$0xf] %vm1610, %v1507
      %1705 = vst.msk [vmem:[%s172 + $0x178] sm:$0xf] %vm1610, %v1508
      %1706 = vst.msk [vmem:[%s172 + $0x17c] sm:$0xf] %vm1610, %v1509
      %1707 = vst.msk [vmem:[%s172 + $0x180] sm:$0xf] %vm1610, %v1510
      %1708 = vst.msk [vmem:[%s172 + $0x184] sm:$0xf] %vm1610, %v1511
      %s1709 = smul.u32 98, %s14
      %p1710 = scmp.lt.s32.totalorder %s1709, 195
      %s1711 = scalar_select %p1710, %s1709, 195
      %s1712 = smul.addr %s1711, 4
      %s1713 = scalar_lea.vmem %s3, %s1712
      // Predicated region
      $region33: #{image_encoder.3} parent=31 // pred_check
        %p1714 = pneg %p100
      $region34: #{image_encoder.3} parent=31 // pred_check_branch
        %1716 = sbr.rel (%p1714) target = $region36
      $region35: #{image_encoder.3} parent=31 // pred_region
        %s1717 = smul.u32 98, %s14
      $region36: #{image_encoder.3} parent=31 // pred_fallthru
        _
    $region32: #{image_encoder.3} parent=5 // pred_fallthru
      _
    %p1718 = scmp.le.s32.totalorder 2, %s9
    // Predicated region
    $region37: #{image_encoder.3} parent=5 // pred_check
      %p1719 = pneg %p1718
    $region38: #{image_encoder.3} parent=5 // pred_check_branch
      %1721 = sbr.rel (%p1719) target = $region40
    $region39: #{image_encoder.3} parent=5 // pred_region
      %s1722 = ssub.s32 %s9, 2
      // Predicated region
      $region41: #{image_encoder.3} parent=39 // pred_check
        %p1723 = pneg %p106
      $region42: #{image_encoder.3} parent=39 // pred_check_branch
        %1725 = sbr.rel (%p1723) target = $region44
      $region43: #{image_encoder.3} parent=39 // pred_region
        %s1726 = smul.u32 98, %s15
        %p1727 = scmp.lt.s32.totalorder %s1726, 195
        %s1728 = scalar_select %p1727, %s1726, 195
        %s1729 = smul.addr %s1728, 4
        %s1730 = scalar_lea.vmem %s3, %s1729
      $region44: #{image_encoder.3} parent=39 // pred_fallthru
        _
    $region40: #{image_encoder.3} parent=5 // pred_fallthru
      _
  $region6: #{image_encoder.3} parent=0 // loop_footer
    %s13 = sadd.s32 1, %s9
  $region7: #{image_encoder.3} parent=0 // loop_footer_branch
    %8 = sbr.rel target = $region3
  $region8: #{image_encoder.3} parent=0 // loop_exit
    _

// kernel: image_encoder.4
$region0: #{image_encoder.4}
  #allocation0 [shape = 'u32[]', space=smem, size = 0x4, offset = 0x4, fixed_abs, tag = 'smem constant byte address 0x4 - core index']
  #allocation1 [shape = 'u32[144,128]{1,0:T(1,128)}', space=vmem, size = 0x12000, scoped, tag = 'internal scratch']
  %s0 = inlined_call_operand.vmem [shape: bf16[200,400], index: 0, kind: input, shape index: {}]
  %s1 = inlined_call_operand.vmem [shape: bf16[400,32], index: 1, kind: input, shape index: {}]
  %s2 = inlined_call_operand.vmem [shape: f32[1,32], index: 2, kind: input, shape index: {}]
  %s3 = inlined_call_operand.vmem [shape: bf16[200,32], index: 3, kind: output, shape index: {}]
  %s4 = sld [smem:[#allocation0]]
  $region22: #{image_encoder.4} parent=0
    _
  %s6 = ssub.s32 1, %s4
  %s7 = scalar_select 0, %s6, %s4
  // Predicated region
  $region2: #{image_encoder.4} parent=0 // pred_check
    _
  $region3: #{image_encoder.4} parent=0 // pred_check_branch
    %9 = sbr.rel (0) target = $region5
  $region4: #{image_encoder.4} parent=0 // pred_region
    _
  $region5: #{image_encoder.4} parent=0 // pred_fallthru
    _
  // Predicated region
  $region6: #{image_encoder.4} parent=0 // pred_check
    _
  $region7: #{image_encoder.4} parent=0 // pred_check_branch
    %11 = sbr.rel (0) target = $region9
  $region8: #{image_encoder.4} parent=0 // pred_region
    _
  $region9: #{image_encoder.4} parent=0 // pred_fallthru
    _
  // Predicated region
  $region10: #{image_encoder.4} parent=0 // pred_check
    _
  $region11: #{image_encoder.4} parent=0 // pred_check_branch
    %13 = sbr.rel (0) target = $region13
  $region12: #{image_encoder.4} parent=0 // pred_region
    _
  $region13: #{image_encoder.4} parent=0 // pred_fallthru
    _
  %v15 = vld [vmem:[%s0] sm:$0xff]
  %v16 = vld [vmem:[%s0 + $0x8] sm:$0xff]
  %v17 = vld [vmem:[%s0 + $0x10] sm:$0xff]
  %v18 = vld [vmem:[%s0 + $0x18] sm:$0xff]
  %v19 = vld [vmem:[%s0 + $0x20] sm:$0xff]
  %v20 = vld [vmem:[%s0 + $0x28] sm:$0xff]
  %v21 = vld [vmem:[%s0 + $0x30] sm:$0xff]
  %v22 = vld [vmem:[%s0 + $0x38] sm:$0xff]
  %v23 = vld [vmem:[%s0 + $0x40] sm:$0xff]
  %v24 = vld [vmem:[%s0 + $0x48] sm:$0xff]
  %v25 = vld [vmem:[%s0 + $0x50] sm:$0xff]
  %v26 = vld [vmem:[%s0 + $0x58] sm:$0xff]
  %v27 = vld [vmem:[%s0 + $0x60] sm:$0xff]
  %v28 = vld [vmem:[%s0 + $0x68] sm:$0xff]
  %v29 = vld [vmem:[%s0 + $0x70] sm:$0xff]
  %v30 = vld [vmem:[%s0 + $0x78] sm:$0xff]
  %v31 = vld [vmem:[%s0 + $0x80] sm:$0xff]
  %v32 = vld [vmem:[%s0 + $0x88] sm:$0xff]
  %v33 = vld [vmem:[%s0 + $0x90] sm:$0xff]
  %v34 = vld [vmem:[%s0 + $0x98] sm:$0xff]
  %v35 = vld [vmem:[%s0 + $0xa0] sm:$0xff]
  %v36 = vld [vmem:[%s0 + $0xa8] sm:$0xff]
  %v37 = vld [vmem:[%s0 + $0xb0] sm:$0xff]
  %v38 = vld [vmem:[%s0 + $0xb8] sm:$0xff]
  %v39 = vld [vmem:[%s0 + $0xc0] sm:$0xff]
  %v40 = vld [vmem:[%s0 + $0xc8] sm:$0xff]
  %v41 = vld [vmem:[%s0 + $0xd0] sm:$0xff]
  %v42 = vld [vmem:[%s0 + $0xd8] sm:$0xff]
  %v43 = vld [vmem:[%s0 + $0xe0] sm:$0xff]
  %v44 = vld [vmem:[%s0 + $0xe8] sm:$0xff]
  %v45 = vld [vmem:[%s0 + $0xf0] sm:$0xff]
  %v46 = vld [vmem:[%s0 + $0xf8] sm:$0xff]
  %v47 = vld [vmem:[%s0 + $0x100] sm:$0xff]
  %v48 = vld [vmem:[%s0 + $0x108] sm:$0xff]
  %v49 = vld [vmem:[%s0 + $0x110] sm:$0xff]
  %v50 = vld [vmem:[%s0 + $0x118] sm:$0xff]
  %v51 = vld [vmem:[%s0 + $0x120] sm:$0xff]
  %v52 = vld [vmem:[%s0 + $0x128] sm:$0xff]
  %v53 = vld [vmem:[%s0 + $0x130] sm:$0xff]
  %v54 = vld [vmem:[%s0 + $0x138] sm:$0xff]
  %v55 = vld [vmem:[%s0 + $0x140] sm:$0xff]
  %v56 = vld [vmem:[%s0 + $0x148] sm:$0xff]
  %v57 = vld [vmem:[%s0 + $0x150] sm:$0xff]
  %v58 = vld [vmem:[%s0 + $0x158] sm:$0xff]
  %v59 = vld [vmem:[%s0 + $0x160] sm:$0xff]
  %v60 = vld [vmem:[%s0 + $0x168] sm:$0xff]
  %v61 = vld [vmem:[%s0 + $0x170] sm:$0xff]
  %v62 = vld [vmem:[%s0 + $0x178] sm:$0xff]
  %v63 = vld [vmem:[%s0 + $0x180] sm:$0xff]
  %v64 = vld [vmem:[%s0 + $0x188] sm:$0xff]
  %v65 = vld [vmem:[%s1] sm:$0xf]
  %v66 = vld [vmem:[%s1 + $0x4] sm:$0xf]
  %v67 = vld [vmem:[%s1 + $0x8] sm:$0xf]
  %v68 = vld [vmem:[%s1 + $0xc] sm:$0xf]
  %v69 = vld [vmem:[%s1 + $0x10] sm:$0xf]
  %v70 = vld [vmem:[%s1 + $0x14] sm:$0xf]
  %v71 = vld [vmem:[%s1 + $0x18] sm:$0xf]
  %v72 = vld [vmem:[%s1 + $0x1c] sm:$0xf]
  %v73 = vld [vmem:[%s1 + $0x20] sm:$0xf]
  %v74 = vld [vmem:[%s1 + $0x24] sm:$0xf]
  %v75 = vld [vmem:[%s1 + $0x28] sm:$0xf]
  %v76 = vld [vmem:[%s1 + $0x2c] sm:$0xf]
  %v77 = vld [vmem:[%s1 + $0x30] sm:$0xf]
  %v78 = vld [vmem:[%s1 + $0x34] sm:$0xf]
  %v79 = vld [vmem:[%s1 + $0x38] sm:$0xf]
  %v80 = vld [vmem:[%s1 + $0x3c] sm:$0xf]
  %v81 = vld [vmem:[%s1 + $0x40] sm:$0xf]
  %v82 = vld [vmem:[%s1 + $0x44] sm:$0xf]
  %v83 = vld [vmem:[%s1 + $0x48] sm:$0xf]
  %v84 = vld [vmem:[%s1 + $0x4c] sm:$0xf]
  %v85 = vld [vmem:[%s1 + $0x50] sm:$0xf]
  %v86 = vld [vmem:[%s1 + $0x54] sm:$0xf]
  %v87 = vld [vmem:[%s1 + $0x58] sm:$0xf]
  %v88 = vld [vmem:[%s1 + $0x5c] sm:$0xf]
  %v89 = vld [vmem:[%s1 + $0x60] sm:$0xf]
  %v90 = vld [vmem:[%s1 + $0x64] sm:$0xf]
  %v91 = vld [vmem:[%s1 + $0x68] sm:$0xf]
  %v92 = vld [vmem:[%s1 + $0x6c] sm:$0xf]
  %v93 = vld [vmem:[%s1 + $0x70] sm:$0xf]
  %v94 = vld [vmem:[%s1 + $0x74] sm:$0xf]
  %v95 = vld [vmem:[%s1 + $0x78] sm:$0xf]
  %v96 = vld [vmem:[%s1 + $0x7c] sm:$0xf]
  %v97 = vld [vmem:[%s1 + $0x80] sm:$0xf]
  %v98 = vld [vmem:[%s1 + $0x84] sm:$0xf]
  %v99 = vld [vmem:[%s1 + $0x88] sm:$0xf]
  %v100 = vld [vmem:[%s1 + $0x8c] sm:$0xf]
  %v101 = vld [vmem:[%s1 + $0x90] sm:$0xf]
  %v102 = vld [vmem:[%s1 + $0x94] sm:$0xf]
  %v103 = vld [vmem:[%s1 + $0x98] sm:$0xf]
  %v104 = vld [vmem:[%s1 + $0x9c] sm:$0xf]
  %v105 = vld [vmem:[%s1 + $0xa0] sm:$0xf]
  %v106 = vld [vmem:[%s1 + $0xa4] sm:$0xf]
  %v107 = vld [vmem:[%s1 + $0xa8] sm:$0xf]
  %v108 = vld [vmem:[%s1 + $0xac] sm:$0xf]
  %v109 = vld [vmem:[%s1 + $0xb0] sm:$0xf]
  %v110 = vld [vmem:[%s1 + $0xb4] sm:$0xf]
  %v111 = vld [vmem:[%s1 + $0xb8] sm:$0xf]
  %v112 = vld [vmem:[%s1 + $0xbc] sm:$0xf]
  %v113 = vld [vmem:[%s1 + $0xc0] sm:$0xf]
  %v114 = vld [vmem:[%s1 + $0xc4] sm:$0xf]
  %v115 = vld [vmem:[%s2] sm:$0x1]
  %v117 = vlaneseq
  %v118 = vshrl.u32 %v117, 7
  %v119 = vsub.s32 0, %v118
  %v120 = vrot.slane %v115, %v119
  %v172 = vunpack.c.l.b16 %v15
  %v173 = vunpack.c.h.b16 %v15
  %v174 = vunpack.c.l.b16 %v16
  %v175 = vunpack.c.h.b16 %v16
  %v176 = vunpack.c.l.b16 %v17
  %v177 = vunpack.c.h.b16 %v17
  %v178 = vunpack.c.l.b16 %v18
  %v179 = vunpack.c.h.b16 %v18
  %v180 = vunpack.c.l.b16 %v19
  %v181 = vunpack.c.h.b16 %v19
  %v182 = vunpack.c.l.b16 %v20
  %v183 = vunpack.c.h.b16 %v20
  %v184 = vunpack.c.l.b16 %v21
  %v185 = vunpack.c.h.b16 %v21
  %v186 = vunpack.c.l.b16 %v22
  %v187 = vunpack.c.h.b16 %v22
  %v188 = vunpack.c.l.b16 %v23
  %v189 = vunpack.c.h.b16 %v23
  %v190 = vunpack.c.l.b16 %v24
  %v191 = vunpack.c.h.b16 %v24
  %v192 = vunpack.c.l.b16 %v25
  %v193 = vunpack.c.h.b16 %v25
  %v194 = vunpack.c.l.b16 %v26
  %v195 = vunpack.c.h.b16 %v26
  %v196 = vunpack.c.l.b16 %v27
  %v197 = vunpack.c.h.b16 %v27
  %v198 = vunpack.c.l.b16 %v28
  %v199 = vunpack.c.h.b16 %v28
  %v200 = vunpack.c.l.b16 %v29
  %v201 = vunpack.c.h.b16 %v29
  %v202 = vunpack.c.l.b16 %v30
  %v203 = vunpack.c.h.b16 %v30
  %v204 = vunpack.c.l.b16 %v31
  %v205 = vunpack.c.h.b16 %v31
  %v206 = vunpack.c.l.b16 %v32
  %v207 = vunpack.c.h.b16 %v32
  %v208 = vunpack.c.l.b16 %v33
  %v209 = vunpack.c.h.b16 %v33
  %v210 = vunpack.c.l.b16 %v34
  %v211 = vunpack.c.h.b16 %v34
  %v212 = vunpack.c.l.b16 %v35
  %v213 = vunpack.c.h.b16 %v35
  %v214 = vunpack.c.l.b16 %v36
  %v215 = vunpack.c.h.b16 %v36
  %v216 = vunpack.c.l.b16 %v37
  %v217 = vunpack.c.h.b16 %v37
  %v218 = vunpack.c.l.b16 %v38
  %v219 = vunpack.c.h.b16 %v38
  %v220 = vunpack.c.l.b16 %v39
  %v221 = vunpack.c.h.b16 %v39
  %v222 = vunpack.c.l.b16 %v40
  %v223 = vunpack.c.h.b16 %v40
  %v224 = vunpack.c.l.b16 %v41
  %v225 = vunpack.c.h.b16 %v41
  %v226 = vunpack.c.l.b16 %v42
  %v227 = vunpack.c.h.b16 %v42
  %v228 = vunpack.c.l.b16 %v43
  %v229 = vunpack.c.h.b16 %v43
  %v230 = vunpack.c.l.b16 %v44
  %v231 = vunpack.c.h.b16 %v44
  %v232 = vunpack.c.l.b16 %v45
  %v233 = vunpack.c.h.b16 %v45
  %v234 = vunpack.c.l.b16 %v46
  %v235 = vunpack.c.h.b16 %v46
  %v236 = vunpack.c.l.b16 %v47
  %v237 = vunpack.c.h.b16 %v47
  %v238 = vunpack.c.l.b16 %v48
  %v239 = vunpack.c.h.b16 %v48
  %v240 = vunpack.c.l.b16 %v49
  %v241 = vunpack.c.h.b16 %v49
  %v242 = vunpack.c.l.b16 %v50
  %v243 = vunpack.c.h.b16 %v50
  %v244 = vunpack.c.l.b16 %v51
  %v245 = vunpack.c.h.b16 %v51
  %v246 = vunpack.c.l.b16 %v52
  %v247 = vunpack.c.h.b16 %v52
  %v248 = vunpack.c.l.b16 %v53
  %v249 = vunpack.c.h.b16 %v53
  %v250 = vunpack.c.l.b16 %v54
  %v251 = vunpack.c.h.b16 %v54
  %v252 = vunpack.c.l.b16 %v55
  %v253 = vunpack.c.h.b16 %v55
  %v254 = vunpack.c.l.b16 %v56
  %v255 = vunpack.c.h.b16 %v56
  %v256 = vunpack.c.l.b16 %v57
  %v257 = vunpack.c.h.b16 %v57
  %v258 = vunpack.c.l.b16 %v58
  %v259 = vunpack.c.h.b16 %v58
  %v260 = vunpack.c.l.b16 %v59
  %v261 = vunpack.c.h.b16 %v59
  %v262 = vunpack.c.l.b16 %v60
  %v263 = vunpack.c.h.b16 %v60
  %v264 = vunpack.c.l.b16 %v61
  %v265 = vunpack.c.h.b16 %v61
  %v266 = vunpack.c.l.b16 %v62
  %v267 = vunpack.c.h.b16 %v62
  %v268 = vunpack.c.l.b16 %v63
  %v269 = vunpack.c.h.b16 %v63
  %v270 = vunpack.c.l.b16 %v64
  %v271 = vunpack.c.h.b16 %v64
  %v272 = vpack.c.b16 %v176, %v172
  %v273 = vpack.c.b16 %v177, %v173
  %v274 = vpack.c.b16 %v178, %v174
  %v275 = vpack.c.b16 %v179, %v175
  %v276 = vpack.c.b16 %v184, %v180
  %v277 = vpack.c.b16 %v185, %v181
  %v278 = vpack.c.b16 %v186, %v182
  %v279 = vpack.c.b16 %v187, %v183
  %v280 = vpack.c.b16 %v192, %v188
  %v281 = vpack.c.b16 %v193, %v189
  %v282 = vpack.c.b16 %v194, %v190
  %v283 = vpack.c.b16 %v195, %v191
  %v284 = vpack.c.b16 %v200, %v196
  %v285 = vpack.c.b16 %v201, %v197
  %v286 = vpack.c.b16 %v202, %v198
  %v287 = vpack.c.b16 %v203, %v199
  %v288 = vpack.c.b16 %v208, %v204
  %v289 = vpack.c.b16 %v209, %v205
  %v290 = vpack.c.b16 %v210, %v206
  %v291 = vpack.c.b16 %v211, %v207
  %v292 = vpack.c.b16 %v216, %v212
  %v293 = vpack.c.b16 %v217, %v213
  %v294 = vpack.c.b16 %v218, %v214
  %v295 = vpack.c.b16 %v219, %v215
  %v296 = vpack.c.b16 %v224, %v220
  %v297 = vpack.c.b16 %v225, %v221
  %v298 = vpack.c.b16 %v226, %v222
  %v299 = vpack.c.b16 %v227, %v223
  %v300 = vpack.c.b16 %v232, %v228
  %v301 = vpack.c.b16 %v233, %v229
  %v302 = vpack.c.b16 %v234, %v230
  %v303 = vpack.c.b16 %v235, %v231
  %v304 = vpack.c.b16 %v240, %v236
  %v305 = vpack.c.b16 %v241, %v237
  %v306 = vpack.c.b16 %v242, %v238
  %v307 = vpack.c.b16 %v243, %v239
  %v308 = vpack.c.b16 %v248, %v244
  %v309 = vpack.c.b16 %v249, %v245
  %v310 = vpack.c.b16 %v250, %v246
  %v311 = vpack.c.b16 %v251, %v247
  %v312 = vpack.c.b16 %v256, %v252
  %v313 = vpack.c.b16 %v257, %v253
  %v314 = vpack.c.b16 %v258, %v254
  %v315 = vpack.c.b16 %v259, %v255
  %v316 = vpack.c.b16 %v264, %v260
  %v317 = vpack.c.b16 %v265, %v261
  %v318 = vpack.c.b16 %v266, %v262
  %v319 = vpack.c.b16 %v267, %v263
  %v320 = vpack.c.b16 %v268, %v268
  %v321 = vpack.c.b16 %v269, %v269
  %v322 = vpack.c.b16 %v270, %v270
  %v323 = vpack.c.b16 %v271, %v271
  %v413 = vunpack.c.l.b16 %v65
  %v414 = vunpack.c.l.b16 %v66
  %v415 = vunpack.c.l.b16 %v67
  %v416 = vunpack.c.l.b16 %v68
  %v417 = vunpack.c.l.b16 %v69
  %v418 = vunpack.c.l.b16 %v70
  %v419 = vunpack.c.l.b16 %v71
  %v420 = vunpack.c.l.b16 %v72
  %v421 = vunpack.c.l.b16 %v73
  %v422 = vunpack.c.l.b16 %v74
  %v423 = vunpack.c.l.b16 %v75
  %v424 = vunpack.c.l.b16 %v76
  %v425 = vunpack.c.l.b16 %v77
  %v426 = vunpack.c.l.b16 %v78
  %v427 = vunpack.c.l.b16 %v79
  %v428 = vunpack.c.l.b16 %v80
  %v429 = vunpack.c.l.b16 %v81
  %v430 = vunpack.c.l.b16 %v82
  %v431 = vunpack.c.l.b16 %v83
  %v432 = vunpack.c.l.b16 %v84
  %v433 = vunpack.c.l.b16 %v85
  %v434 = vunpack.c.l.b16 %v86
  %v435 = vunpack.c.l.b16 %v87
  %v436 = vunpack.c.l.b16 %v88
  %v437 = vunpack.c.l.b16 %v89
  %v438 = vunpack.c.l.b16 %v90
  %v439 = vunpack.c.l.b16 %v91
  %v440 = vunpack.c.l.b16 %v92
  %v441 = vunpack.c.l.b16 %v93
  %v442 = vunpack.c.l.b16 %v94
  %v443 = vunpack.c.l.b16 %v95
  %v444 = vunpack.c.l.b16 %v96
  %v445 = vunpack.c.l.b16 %v97
  %v446 = vunpack.c.l.b16 %v98
  %v447 = vunpack.c.l.b16 %v99
  %v448 = vunpack.c.l.b16 %v100
  %v449 = vunpack.c.l.b16 %v101
  %v450 = vunpack.c.l.b16 %v102
  %v451 = vunpack.c.l.b16 %v103
  %v452 = vunpack.c.l.b16 %v104
  %v453 = vunpack.c.l.b16 %v105
  %v454 = vunpack.c.l.b16 %v106
  %v455 = vunpack.c.l.b16 %v107
  %v456 = vunpack.c.l.b16 %v108
  %v457 = vunpack.c.l.b16 %v109
  %v458 = vunpack.c.l.b16 %v110
  %v459 = vunpack.c.l.b16 %v111
  %v460 = vunpack.c.l.b16 %v112
  %v461 = vunpack.c.l.b16 %v113
  %v462 = vunpack.c.l.b16 %v114
  %v463 = vpack.c.b16 %v414, %v413
  %v464 = vpack.c.b16 %v416, %v415
  %v465 = vpack.c.b16 %v418, %v417
  %v466 = vpack.c.b16 %v420, %v419
  %v467 = vpack.c.b16 %v422, %v421
  %v468 = vpack.c.b16 %v424, %v423
  %v469 = vpack.c.b16 %v426, %v425
  %v470 = vpack.c.b16 %v428, %v427
  %v471 = vpack.c.b16 %v430, %v429
  %v472 = vpack.c.b16 %v432, %v431
  %v473 = vpack.c.b16 %v434, %v433
  %v474 = vpack.c.b16 %v436, %v435
  %v475 = vpack.c.b16 %v438, %v437
  %v476 = vpack.c.b16 %v440, %v439
  %v477 = vpack.c.b16 %v442, %v441
  %v478 = vpack.c.b16 %v444, %v443
  %v479 = vpack.c.b16 %v446, %v445
  %v480 = vpack.c.b16 %v448, %v447
  %v481 = vpack.c.b16 %v450, %v449
  %v482 = vpack.c.b16 %v452, %v451
  %v483 = vpack.c.b16 %v454, %v453
  %v484 = vpack.c.b16 %v456, %v455
  %v485 = vpack.c.b16 %v458, %v457
  %v486 = vpack.c.b16 %v460, %v459
  %v487 = vpack.c.b16 %v462, %v461
  %vm513 = vcmask 130048
  %v515 = vsel %vm513, %v275, 0
  %v518 = vsel %vm513, %v279, 0
  %v521 = vsel %vm513, %v283, 0
  %v524 = vsel %vm513, %v287, 0
  %v527 = vsel %vm513, %v291, 0
  %v530 = vsel %vm513, %v295, 0
  %v533 = vsel %vm513, %v299, 0
  %v536 = vsel %vm513, %v303, 0
  %v539 = vsel %vm513, %v307, 0
  %v542 = vsel %vm513, %v311, 0
  %v545 = vsel %vm513, %v315, 0
  %v548 = vsel %vm513, %v319, 0
  %v551 = vsel %vm513, %v323, 0
  %553 = vmatprep.subr.bf16.mxu0 0
  %554 = vmatpush1.bf16.msra.mxu0 %v463
  %555 = vmatprep.subr.bf16.mxu0 0
  %556 = vmatpush1.bf16.msra.mxu0 %v464
  %557 = vmatprep.subr.bf16.mxu0 0
  %558 = vmatpush1.bf16.msra.mxu0 %v465
  %559 = vmatprep.subr.bf16.mxu0 0
  %560 = vmatpush1.bf16.msra.mxu0 %v466
  %561 = vmatprep.subr.bf16.mxu0 0
  %562 = vmatpush1.bf16.msra.mxu0 %v467
  %563 = vmatprep.subr.bf16.mxu0 0
  %564 = vmatpush1.bf16.msra.mxu0 %v468
  %565 = vmatprep.subr.bf16.mxu0 0
  %566 = vmatpush1.bf16.msra.mxu0 %v469
  %567 = vmatprep.subr.bf16.mxu0 0
  %568 = vmatpush1.bf16.msra.mxu0 %v470
  %569 = vmatprep.subr.bf16.mxu0 0
  %570 = vmatpush1.bf16.msra.mxu0 %v471
  %571 = vmatprep.subr.bf16.mxu0 0
  %572 = vmatpush1.bf16.msra.mxu0 %v472
  %573 = vmatprep.subr.bf16.mxu0 0
  %574 = vmatpush1.bf16.msra.mxu0 %v473
  %575 = vmatprep.subr.bf16.mxu0 0
  %576 = vmatpush1.bf16.msra.mxu0 %v474
  %577 = vmatprep.subr.bf16.mxu0 0
  %578 = vmatpush1.bf16.msra.mxu0 %v475
  %579 = vmatprep.subr.bf16.mxu0 0
  %580 = vmatpush1.bf16.msra.mxu0 %v476
  %581 = vmatprep.subr.bf16.mxu0 0
  %582 = vmatpush1.bf16.msra.mxu0 %v477
  %583 = vmatprep.subr.bf16.mxu0 0
  %584 = vmatpush1.bf16.msra.mxu0 %v478
  %585 = vmatprep.mubr.bf16.mxu0 %v273
  %586 = vmatmul.mubr.bf16.gmra.mrb[0].mxu0 %v272
  %v587 = vpop.f32.mrb[0].mxu0
  %v588 = vadd.f32 %v120, %v587
  %v589 = vpop.f32.mrb[0].mxu0
  %v590 = vpop.f32.mrb[0].mxu0
  %v591 = vadd.f32 %v120, %v590
  %v592 = vpop.f32.mrb[0].mxu0
  %593 = vmatprep.mubr.bf16.mxu0 %v277
  %594 = vmatmul.mubr.bf16.gmra.mrb[0].mxu0 %v276
  %v595 = vpop.f32.mrb[0].mxu0
  %v596 = vadd.f32 %v120, %v595
  %v597 = vpop.f32.mrb[0].mxu0
  %v598 = vpop.f32.mrb[0].mxu0
  %v599 = vadd.f32 %v120, %v598
  %v600 = vpop.f32.mrb[0].mxu0
  %601 = vmatprep.mubr.bf16.mxu0 %v281
  %602 = vmatmul.mubr.bf16.gmra.mrb[0].mxu0 %v280
  %v603 = vpop.f32.mrb[0].mxu0
  %v604 = vadd.f32 %v120, %v603
  %v605 = vpop.f32.mrb[0].mxu0
  %v606 = vpop.f32.mrb[0].mxu0
  %v607 = vadd.f32 %v120, %v606
  %v608 = vpop.f32.mrb[0].mxu0
  %609 = vmatprep.mubr.bf16.mxu0 %v285
  %610 = vmatmul.mubr.bf16.gmra.mrb[0].mxu0 %v284
  %v611 = vpop.f32.mrb[0].mxu0
  %v612 = vadd.f32 %v120, %v611
  %v613 = vpop.f32.mrb[0].mxu0
  %v614 = vpop.f32.mrb[0].mxu0
  %v615 = vadd.f32 %v120, %v614
  %v616 = vpop.f32.mrb[0].mxu0
  %617 = vmatprep.mubr.bf16.mxu0 %v289
  %618 = vmatmul.mubr.bf16.gmra.mrb[0].mxu0 %v288
  %v619 = vpop.f32.mrb[0].mxu0
  %v620 = vadd.f32 %v120, %v619
  %v621 = vpop.f32.mrb[0].mxu0
  %v622 = vpop.f32.mrb[0].mxu0
  %v623 = vadd.f32 %v120, %v622
  %v624 = vpop.f32.mrb[0].mxu0
  %625 = vmatprep.mubr.bf16.mxu0 %v293
  %626 = vmatmul.mubr.bf16.gmra.mrb[0].mxu0 %v292
  %v627 = vpop.f32.mrb[0].mxu0
  %v628 = vadd.f32 %v120, %v627
  %v629 = vpop.f32.mrb[0].mxu0
  %v630 = vpop.f32.mrb[0].mxu0
  %v631 = vadd.f32 %v120, %v630
  %v632 = vpop.f32.mrb[0].mxu0
  %633 = vmatprep.mubr.bf16.mxu0 %v297
  %634 = vmatmul.mubr.bf16.gmra.mrb[0].mxu0 %v296
  %v635 = vpop.f32.mrb[0].mxu0
  %v636 = vadd.f32 %v120, %v635
  %v637 = vpop.f32.mrb[0].mxu0
  %v638 = vpop.f32.mrb[0].mxu0
  %v639 = vadd.f32 %v120, %v638
  %v640 = vpop.f32.mrb[0].mxu0
  %641 = vmatprep.mubr.bf16.mxu0 %v301
  %642 = vmatmul.mubr.bf16.gmra.mrb[0].mxu0 %v300
  %v643 = vpop.f32.mrb[0].mxu0
  %v644 = vadd.f32 %v120, %v643
  %v645 = vpop.f32.mrb[0].mxu0
  %v646 = vpop.f32.mrb[0].mxu0
  %v647 = vadd.f32 %v120, %v646
  %v648 = vpop.f32.mrb[0].mxu0
  %649 = vmatprep.mubr.bf16.mxu0 %v305
  %650 = vmatmul.mubr.bf16.gmra.mrb[0].mxu0 %v304
  %v651 = vpop.f32.mrb[0].mxu0
  %v652 = vadd.f32 %v120, %v651
  %v653 = vpop.f32.mrb[0].mxu0
  %v654 = vpop.f32.mrb[0].mxu0
  %v655 = vadd.f32 %v120, %v654
  %v656 = vpop.f32.mrb[0].mxu0
  %657 = vmatprep.mubr.bf16.mxu0 %v309
  %658 = vmatmul.mubr.bf16.gmra.mrb[0].mxu0 %v308
  %v659 = vpop.f32.mrb[0].mxu0
  %v660 = vadd.f32 %v120, %v659
  %v661 = vpop.f32.mrb[0].mxu0
  %v662 = vpop.f32.mrb[0].mxu0
  %v663 = vadd.f32 %v120, %v662
  %v664 = vpop.f32.mrb[0].mxu0
  %665 = vmatprep.mubr.bf16.mxu0 %v313
  %666 = vmatmul.mubr.bf16.gmra.mrb[0].mxu0 %v312
  %v667 = vpop.f32.mrb[0].mxu0
  %v668 = vadd.f32 %v120, %v667
  %v669 = vpop.f32.mrb[0].mxu0
  %v670 = vpop.f32.mrb[0].mxu0
  %v671 = vadd.f32 %v120, %v670
  %v672 = vpop.f32.mrb[0].mxu0
  %673 = vmatprep.mubr.bf16.mxu0 %v317
  %674 = vmatmul.mubr.bf16.gmra.mrb[0].mxu0 %v316
  %v675 = vpop.f32.mrb[0].mxu0
  %v676 = vadd.f32 %v120, %v675
  %v677 = vpop.f32.mrb[0].mxu0
  %v678 = vpop.f32.mrb[0].mxu0
  %v679 = vadd.f32 %v120, %v678
  %v680 = vpop.f32.mrb[0].mxu0
  %681 = vmatprep.mubr.bf16.mxu0 %v321
  %682 = vmatmul.mubr.bf16.gmra.mrb[0].mxu0 %v320
  %v683 = vpop.f32.mrb[0].mxu0
  %v684 = vadd.f32 %v120, %v683
  %v685 = vpop.f32.mrb[0].mxu0
  %v686 = vpop.f32.mrb[0].mxu0
  %v687 = vpop.f32.mrb[0].mxu0
  %688 = vdwg.mxu0
  %689 = vmatprep.subr.bf16.mxu0 0
  %690 = vmatpush1.bf16.msra.mxu0 %v479
  %691 = vmatprep.subr.bf16.mxu0 0
  %692 = vmatpush1.bf16.msra.mxu0 %v480
  %693 = vmatprep.subr.bf16.mxu0 0
  %694 = vmatpush1.bf16.msra.mxu0 %v481
  %695 = vmatprep.subr.bf16.mxu0 0
  %696 = vmatpush1.bf16.msra.mxu0 %v482
  %697 = vmatprep.subr.bf16.mxu0 0
  %698 = vmatpush1.bf16.msra.mxu0 %v483
  %699 = vmatprep.subr.bf16.mxu0 0
  %700 = vmatpush1.bf16.msra.mxu0 %v484
  %701 = vmatprep.subr.bf16.mxu0 0
  %702 = vmatpush1.bf16.msra.mxu0 %v485
  %703 = vmatprep.subr.bf16.mxu0 0
  %704 = vmatpush1.bf16.msra.mxu0 %v486
  %705 = vmatprep.subr.bf16.mxu0 0
  %706 = vmatpush1.bf16.msra.mxu0 %v487
  %707 = vmatprep.subr.bf16.mxu0 0
  %708 = vmatpush1.bf16.msra.mxu0 0
  %709 = vmatprep.subr.bf16.mxu0 0
  %710 = vmatpush1.bf16.msra.mxu0 0
  %711 = vmatprep.subr.bf16.mxu0 0
  %712 = vmatpush1.bf16.msra.mxu0 0
  %713 = vmatprep.subr.bf16.mxu0 0
  %714 = vmatpush1.bf16.msra.mxu0 0
  %715 = vmatprep.subr.bf16.mxu0 0
  %716 = vmatpush1.bf16.msra.mxu0 0
  %717 = vmatprep.subr.bf16.mxu0 0
  %718 = vmatpush1.bf16.msra.mxu0 0
  %719 = vmatprep.subr.bf16.mxu0 0
  %720 = vmatpush1.bf16.msra.mxu0 0
  %721 = vmatprep.mubr.bf16.mxu0 %v515
  %722 = vmatmul.mubr.bf16.gmra.mrb[0].mxu0 %v274
  %v723 = vpop.f32.mrb[0].mxu0
  %v724 = vadd.f32 %v588, %v723
  %v725 = vpop.f32.mrb[0].mxu0
  %v726 = vpop.f32.mrb[0].mxu0
  %v727 = vadd.f32 %v591, %v726
  %v728 = vpop.f32.mrb[0].mxu0
  %729 = vmatprep.mubr.bf16.mxu0 %v518
  %730 = vmatmul.mubr.bf16.gmra.mrb[0].mxu0 %v278
  %v731 = vpop.f32.mrb[0].mxu0
  %v732 = vadd.f32 %v596, %v731
  %v733 = vpop.f32.mrb[0].mxu0
  %v734 = vpop.f32.mrb[0].mxu0
  %v735 = vadd.f32 %v599, %v734
  %v736 = vpop.f32.mrb[0].mxu0
  %737 = vmatprep.mubr.bf16.mxu0 %v521
  %738 = vmatmul.mubr.bf16.gmra.mrb[0].mxu0 %v282
  %v739 = vpop.f32.mrb[0].mxu0
  %v740 = vadd.f32 %v604, %v739
  %v741 = vpop.f32.mrb[0].mxu0
  %v742 = vpop.f32.mrb[0].mxu0
  %v743 = vadd.f32 %v607, %v742
  %v744 = vpop.f32.mrb[0].mxu0
  %745 = vmatprep.mubr.bf16.mxu0 %v524
  %746 = vmatmul.mubr.bf16.gmra.mrb[0].mxu0 %v286
  %v747 = vpop.f32.mrb[0].mxu0
  %v748 = vadd.f32 %v612, %v747
  %v749 = vpop.f32.mrb[0].mxu0
  %v750 = vpop.f32.mrb[0].mxu0
  %v751 = vadd.f32 %v615, %v750
  %v752 = vpop.f32.mrb[0].mxu0
  %753 = vmatprep.mubr.bf16.mxu0 %v527
  %754 = vmatmul.mubr.bf16.gmra.mrb[0].mxu0 %v290
  %v755 = vpop.f32.mrb[0].mxu0
  %v756 = vadd.f32 %v620, %v755
  %v757 = vpop.f32.mrb[0].mxu0
  %v758 = vpop.f32.mrb[0].mxu0
  %v759 = vadd.f32 %v623, %v758
  %v760 = vpop.f32.mrb[0].mxu0
  %761 = vmatprep.mubr.bf16.mxu0 %v530
  %762 = vmatmul.mubr.bf16.gmra.mrb[0].mxu0 %v294
  %v763 = vpop.f32.mrb[0].mxu0
  %v764 = vadd.f32 %v628, %v763
  %v765 = vpop.f32.mrb[0].mxu0
  %v766 = vpop.f32.mrb[0].mxu0
  %v767 = vadd.f32 %v631, %v766
  %v768 = vpop.f32.mrb[0].mxu0
  %769 = vmatprep.mubr.bf16.mxu0 %v533
  %770 = vmatmul.mubr.bf16.gmra.mrb[0].mxu0 %v298
  %v771 = vpop.f32.mrb[0].mxu0
  %v772 = vadd.f32 %v636, %v771
  %v773 = vpop.f32.mrb[0].mxu0
  %v774 = vpop.f32.mrb[0].mxu0
  %v775 = vadd.f32 %v639, %v774
  %v776 = vpop.f32.mrb[0].mxu0
  %777 = vmatprep.mubr.bf16.mxu0 %v536
  %778 = vmatmul.mubr.bf16.gmra.mrb[0].mxu0 %v302
  %v779 = vpop.f32.mrb[0].mxu0
  %v780 = vadd.f32 %v644, %v779
  %v781 = vpop.f32.mrb[0].mxu0
  %v782 = vpop.f32.mrb[0].mxu0
  %v783 = vadd.f32 %v647, %v782
  %v784 = vpop.f32.mrb[0].mxu0
  %785 = vmatprep.mubr.bf16.mxu0 %v539
  %786 = vmatmul.mubr.bf16.gmra.mrb[0].mxu0 %v306
  %v787 = vpop.f32.mrb[0].mxu0
  %v788 = vadd.f32 %v652, %v787
  %v789 = vpop.f32.mrb[0].mxu0
  %v790 = vpop.f32.mrb[0].mxu0
  %v791 = vadd.f32 %v655, %v790
  %v792 = vpop.f32.mrb[0].mxu0
  %793 = vmatprep.mubr.bf16.mxu0 %v542
  %794 = vmatmul.mubr.bf16.gmra.mrb[0].mxu0 %v310
  %v795 = vpop.f32.mrb[0].mxu0
  %v796 = vadd.f32 %v660, %v795
  %v797 = vpop.f32.mrb[0].mxu0
  %v798 = vpop.f32.mrb[0].mxu0
  %v799 = vadd.f32 %v663, %v798
  %v800 = vpop.f32.mrb[0].mxu0
  %801 = vmatprep.mubr.bf16.mxu0 %v545
  %802 = vmatmul.mubr.bf16.gmra.mrb[0].mxu0 %v314
  %v803 = vpop.f32.mrb[0].mxu0
  %v804 = vadd.f32 %v668, %v803
  %v805 = vpop.f32.mrb[0].mxu0
  %v806 = vpop.f32.mrb[0].mxu0
  %v807 = vadd.f32 %v671, %v806
  %v808 = vpop.f32.mrb[0].mxu0
  %809 = vmatprep.mubr.bf16.mxu0 %v548
  %810 = vmatmul.mubr.bf16.gmra.mrb[0].mxu0 %v318
  %v811 = vpop.f32.mrb[0].mxu0
  %v812 = vadd.f32 %v676, %v811
  %v813 = vpop.f32.mrb[0].mxu0
  %v814 = vpop.f32.mrb[0].mxu0
  %v815 = vadd.f32 %v679, %v814
  %v816 = vpop.f32.mrb[0].mxu0
  %817 = vmatprep.mubr.bf16.mxu0 %v551
  %818 = vmatmul.mubr.bf16.gmra.mrb[0].mxu0 %v322
  %v819 = vpop.f32.mrb[0].mxu0
  %v820 = vadd.f32 %v684, %v819
  %v821 = vpop.f32.mrb[0].mxu0
  %v822 = vpop.f32.mrb[0].mxu0
  %v823 = vpop.f32.mrb[0].mxu0
  %824 = vdwg.mxu0
  %v825 = vmax.f32 %v724, 0.0
  %v826 = vmax.f32 %v727, 0.0
  %v827 = vmax.f32 %v732, 0.0
  %v828 = vmax.f32 %v735, 0.0
  %v829 = vmax.f32 %v740, 0.0
  %v830 = vmax.f32 %v743, 0.0
  %v831 = vmax.f32 %v748, 0.0
  %v832 = vmax.f32 %v751, 0.0
  %v833 = vmax.f32 %v756, 0.0
  %v834 = vmax.f32 %v759, 0.0
  %v835 = vmax.f32 %v764, 0.0
  %v836 = vmax.f32 %v767, 0.0
  %v837 = vmax.f32 %v772, 0.0
  %v838 = vmax.f32 %v775, 0.0
  %v839 = vmax.f32 %v780, 0.0
  %v840 = vmax.f32 %v783, 0.0
  %v841 = vmax.f32 %v788, 0.0
  %v842 = vmax.f32 %v791, 0.0
  %v843 = vmax.f32 %v796, 0.0
  %v844 = vmax.f32 %v799, 0.0
  %v845 = vmax.f32 %v804, 0.0
  %v846 = vmax.f32 %v807, 0.0
  %v847 = vmax.f32 %v812, 0.0
  %v848 = vmax.f32 %v815, 0.0
  %v849 = vmax.f32 %v820, 0.0
  %v850 = vpack.c.bf16 %v826, %v825
  %v851 = vpack.c.bf16 %v828, %v827
  %v852 = vpack.c.bf16 %v830, %v829
  %v853 = vpack.c.bf16 %v832, %v831
  %v854 = vpack.c.bf16 %v834, %v833
  %v855 = vpack.c.bf16 %v836, %v835
  %v856 = vpack.c.bf16 %v838, %v837
  %v857 = vpack.c.bf16 %v840, %v839
  %v858 = vpack.c.bf16 %v842, %v841
  %v859 = vpack.c.bf16 %v844, %v843
  %v860 = vpack.c.bf16 %v846, %v845
  %v861 = vpack.c.bf16 %v848, %v847
  %v862 = vpack.c.bf16 %v849, %v849
  %v876 = vunpack.c.l.b16 %v850
  %v877 = vunpack.c.h.b16 %v850
  %v878 = vunpack.c.l.b16 %v851
  %v879 = vunpack.c.h.b16 %v851
  %v880 = vunpack.c.l.b16 %v852
  %v881 = vunpack.c.h.b16 %v852
  %v882 = vunpack.c.l.b16 %v853
  %v883 = vunpack.c.h.b16 %v853
  %v884 = vunpack.c.l.b16 %v854
  %v885 = vunpack.c.h.b16 %v854
  %v886 = vunpack.c.l.b16 %v855
  %v887 = vunpack.c.h.b16 %v855
  %v888 = vunpack.c.l.b16 %v856
  %v889 = vunpack.c.h.b16 %v856
  %v890 = vunpack.c.l.b16 %v857
  %v891 = vunpack.c.h.b16 %v857
  %v892 = vunpack.c.l.b16 %v858
  %v893 = vunpack.c.h.b16 %v858
  %v894 = vunpack.c.l.b16 %v859
  %v895 = vunpack.c.h.b16 %v859
  %v896 = vunpack.c.l.b16 %v860
  %v897 = vunpack.c.h.b16 %v860
  %v898 = vunpack.c.l.b16 %v861
  %v899 = vunpack.c.h.b16 %v861
  %v900 = vunpack.c.l.b16 %v862
  %v901 = vpack.c.b16 %v876, %v876
  %v902 = vpack.c.b16 %v877, %v877
  %v903 = vpack.c.b16 %v878, %v878
  %v904 = vpack.c.b16 %v879, %v879
  %v905 = vpack.c.b16 %v880, %v880
  %v906 = vpack.c.b16 %v881, %v881
  %v907 = vpack.c.b16 %v882, %v882
  %v908 = vpack.c.b16 %v883, %v883
  %v909 = vpack.c.b16 %v884, %v884
  %v910 = vpack.c.b16 %v885, %v885
  %v911 = vpack.c.b16 %v886, %v886
  %v912 = vpack.c.b16 %v887, %v887
  %v913 = vpack.c.b16 %v888, %v888
  %v914 = vpack.c.b16 %v889, %v889
  %v915 = vpack.c.b16 %v890, %v890
  %v916 = vpack.c.b16 %v891, %v891
  %v917 = vpack.c.b16 %v892, %v892
  %v918 = vpack.c.b16 %v893, %v893
  %v919 = vpack.c.b16 %v894, %v894
  %v920 = vpack.c.b16 %v895, %v895
  %v921 = vpack.c.b16 %v896, %v896
  %v922 = vpack.c.b16 %v897, %v897
  %v923 = vpack.c.b16 %v898, %v898
  %v924 = vpack.c.b16 %v899, %v899
  %v925 = vpack.c.b16 %v900, %v900
  %vm951 = vcmask 257024
  %952 = vst.msk [vmem:[%s3] sm:$0xf] %vm951, %v901
  %953 = vst.msk [vmem:[%s3 + $0x4] sm:$0xf] %vm951, %v902
  %954 = vst.msk [vmem:[%s3 + $0x8] sm:$0xf] %vm951, %v903
  %955 = vst.msk [vmem:[%s3 + $0xc] sm:$0xf] %vm951, %v904
  %956 = vst.msk [vmem:[%s3 + $0x10] sm:$0xf] %vm951, %v905
  %957 = vst.msk [vmem:[%s3 + $0x14] sm:$0xf] %vm951, %v906
  %958 = vst.msk [vmem:[%s3 + $0x18] sm:$0xf] %vm951, %v907
  %959 = vst.msk [vmem:[%s3 + $0x1c] sm:$0xf] %vm951, %v908
  %960 = vst.msk [vmem:[%s3 + $0x20] sm:$0xf] %vm951, %v909
  %961 = vst.msk [vmem:[%s3 + $0x24] sm:$0xf] %vm951, %v910
  %962 = vst.msk [vmem:[%s3 + $0x28] sm:$0xf] %vm951, %v911
  %963 = vst.msk [vmem:[%s3 + $0x2c] sm:$0xf] %vm951, %v912
  %964 = vst.msk [vmem:[%s3 + $0x30] sm:$0xf] %vm951, %v913
  %965 = vst.msk [vmem:[%s3 + $0x34] sm:$0xf] %vm951, %v914
  %966 = vst.msk [vmem:[%s3 + $0x38] sm:$0xf] %vm951, %v915
  %967 = vst.msk [vmem:[%s3 + $0x3c] sm:$0xf] %vm951, %v916
  %968 = vst.msk [vmem:[%s3 + $0x40] sm:$0xf] %vm951, %v917
  %969 = vst.msk [vmem:[%s3 + $0x44] sm:$0xf] %vm951, %v918
  %970 = vst.msk [vmem:[%s3 + $0x48] sm:$0xf] %vm951, %v919
  %971 = vst.msk [vmem:[%s3 + $0x4c] sm:$0xf] %vm951, %v920
  %972 = vst.msk [vmem:[%s3 + $0x50] sm:$0xf] %vm951, %v921
  %973 = vst.msk [vmem:[%s3 + $0x54] sm:$0xf] %vm951, %v922
  %974 = vst.msk [vmem:[%s3 + $0x58] sm:$0xf] %vm951, %v923
  %975 = vst.msk [vmem:[%s3 + $0x5c] sm:$0xf] %vm951, %v924
  %976 = vst.msk [vmem:[%s3 + $0x60] sm:$0xf] %vm951, %v925
  // Predicated region
  $region14: #{image_encoder.4} parent=0 // pred_check
    _
  $region15: #{image_encoder.4} parent=0 // pred_check_branch
    %978 = sbr.rel (0) target = $region17
  $region16: #{image_encoder.4} parent=0 // pred_region
    _
  $region17: #{image_encoder.4} parent=0 // pred_fallthru
    _
  // Predicated region
  $region18: #{image_encoder.4} parent=0 // pred_check
    _
  $region19: #{image_encoder.4} parent=0 // pred_check_branch
    %980 = sbr.rel (0) target = $region21
  $region20: #{image_encoder.4} parent=0 // pred_region
    _
  $region21: #{image_encoder.4} parent=0 // pred_fallthru
    _

// kernel: image_encoder.5
$region0: #{image_encoder.5}
  #allocation0 [shape = 'u32[]', space=smem, size = 0x4, offset = 0x4, fixed_abs, tag = 'smem constant byte address 0x4 - core index']
  #allocation1 [shape = 'u32[144,128]{1,0:T(1,128)}', space=vmem, size = 0x12000, scoped, tag = 'internal scratch']
  %s0 = inlined_call_operand.vmem [shape: bf16[8,804], index: 0, kind: input, shape index: {}]
  %s1 = inlined_call_operand.vmem [shape: bf16[804,64], index: 1, kind: input, shape index: {}]
  %s2 = inlined_call_operand.vmem [shape: f32[1,64], index: 2, kind: input, shape index: {}]
  %s3 = inlined_call_operand.hbm [shape: f32[8,64], index: 3, kind: output, shape index: {}]
  %s4 = sld [smem:[#allocation0]]
  $region22: #{image_encoder.5} parent=0
    _
  %s6 = ssub.s32 1, %s4
  %s7 = scalar_select 0, %s6, %s4
  $region1: #{image_encoder.5} parent=0
    #allocation2 [shape = 'u8[4096]{0}', space=vmem, size = 0x1000, scoped, tag = 'output window, operand 0, single buffered']
    #allocation3 [shape = 's32[1]{0}', space=sflag, size = 0x4, scoped, tag = 'scoped memory for image_encoder.5']
    %8 = vsyncpa [#allocation3], 0
    // Predicated region
    $region2: #{image_encoder.5} parent=1 // pred_check
      _
    $region3: #{image_encoder.5} parent=1 // pred_check_branch
      %10 = sbr.rel (0) target = $region5
    $region4: #{image_encoder.5} parent=1 // pred_region
      _
    $region5: #{image_encoder.5} parent=1 // pred_fallthru
      _
    // Predicated region
    $region6: #{image_encoder.5} parent=1 // pred_check
      _
    $region7: #{image_encoder.5} parent=1 // pred_check_branch
      %12 = sbr.rel (0) target = $region9
    $region8: #{image_encoder.5} parent=1 // pred_region
      _
    $region9: #{image_encoder.5} parent=1 // pred_fallthru
      _
    // Predicated region
    $region10: #{image_encoder.5} parent=1 // pred_check
      _
    $region11: #{image_encoder.5} parent=1 // pred_check_branch
      %14 = sbr.rel (0) target = $region13
    $region12: #{image_encoder.5} parent=1 // pred_region
      _
    $region13: #{image_encoder.5} parent=1 // pred_fallthru
      _
    %v16 = vld [vmem:[%s0] sm:$0xff]
    %v17 = vld [vmem:[%s0 + $0x8] sm:$0xff]
    %v18 = vld [vmem:[%s0 + $0x10] sm:$0xff]
    %v19 = vld [vmem:[%s0 + $0x18] sm:$0xf]
    %v20 = vld [vmem:[%s1] sm:$0xf]
    %v21 = vld [vmem:[%s1 + $0x4] sm:$0xf]
    %v22 = vld [vmem:[%s1 + $0x8] sm:$0xf]
    %v23 = vld [vmem:[%s1 + $0xc] sm:$0xf]
    %v24 = vld [vmem:[%s1 + $0x10] sm:$0xf]
    %v25 = vld [vmem:[%s1 + $0x14] sm:$0xf]
    %v26 = vld [vmem:[%s1 + $0x18] sm:$0xf]
    %v27 = vld [vmem:[%s1 + $0x1c] sm:$0xf]
    %v28 = vld [vmem:[%s1 + $0x20] sm:$0xf]
    %v29 = vld [vmem:[%s1 + $0x24] sm:$0xf]
    %v30 = vld [vmem:[%s1 + $0x28] sm:$0xf]
    %v31 = vld [vmem:[%s1 + $0x2c] sm:$0xf]
    %v32 = vld [vmem:[%s1 + $0x30] sm:$0xf]
    %v33 = vld [vmem:[%s1 + $0x34] sm:$0xf]
    %v34 = vld [vmem:[%s1 + $0x38] sm:$0xf]
    %v35 = vld [vmem:[%s1 + $0x3c] sm:$0xf]
    %v36 = vld [vmem:[%s1 + $0x40] sm:$0xf]
    %v37 = vld [vmem:[%s1 + $0x44] sm:$0xf]
    %v38 = vld [vmem:[%s1 + $0x48] sm:$0xf]
    %v39 = vld [vmem:[%s1 + $0x4c] sm:$0xf]
    %v40 = vld [vmem:[%s1 + $0x50] sm:$0xf]
    %v41 = vld [vmem:[%s1 + $0x54] sm:$0xf]
    %v42 = vld [vmem:[%s1 + $0x58] sm:$0xf]
    %v43 = vld [vmem:[%s1 + $0x5c] sm:$0xf]
    %v44 = vld [vmem:[%s1 + $0x60] sm:$0xf]
    %v45 = vld [vmem:[%s1 + $0x64] sm:$0xf]
    %v46 = vld [vmem:[%s1 + $0x68] sm:$0xf]
    %v47 = vld [vmem:[%s1 + $0x6c] sm:$0xf]
    %v48 = vld [vmem:[%s1 + $0x70] sm:$0xf]
    %v49 = vld [vmem:[%s1 + $0x74] sm:$0xf]
    %v50 = vld [vmem:[%s1 + $0x78] sm:$0xf]
    %v51 = vld [vmem:[%s1 + $0x7c] sm:$0xf]
    %v52 = vld [vmem:[%s1 + $0x80] sm:$0xf]
    %v53 = vld [vmem:[%s1 + $0x84] sm:$0xf]
    %v54 = vld [vmem:[%s1 + $0x88] sm:$0xf]
    %v55 = vld [vmem:[%s1 + $0x8c] sm:$0xf]
    %v56 = vld [vmem:[%s1 + $0x90] sm:$0xf]
    %v57 = vld [vmem:[%s1 + $0x94] sm:$0xf]
    %v58 = vld [vmem:[%s1 + $0x98] sm:$0xf]
    %v59 = vld [vmem:[%s1 + $0x9c] sm:$0xf]
    %v60 = vld [vmem:[%s1 + $0xa0] sm:$0xf]
    %v61 = vld [vmem:[%s1 + $0xa4] sm:$0xf]
    %v62 = vld [vmem:[%s1 + $0xa8] sm:$0xf]
    %v63 = vld [vmem:[%s1 + $0xac] sm:$0xf]
    %v64 = vld [vmem:[%s1 + $0xb0] sm:$0xf]
    %v65 = vld [vmem:[%s1 + $0xb4] sm:$0xf]
    %v66 = vld [vmem:[%s1 + $0xb8] sm:$0xf]
    %v67 = vld [vmem:[%s1 + $0xbc] sm:$0xf]
    %v68 = vld [vmem:[%s1 + $0xc0] sm:$0xf]
    %v69 = vld [vmem:[%s1 + $0xc4] sm:$0xf]
    %v70 = vld [vmem:[%s1 + $0xc8] sm:$0xf]
    %v71 = vld [vmem:[%s1 + $0xcc] sm:$0xf]
    %v72 = vld [vmem:[%s1 + $0xd0] sm:$0xf]
    %v73 = vld [vmem:[%s1 + $0xd4] sm:$0xf]
    %v74 = vld [vmem:[%s1 + $0xd8] sm:$0xf]
    %v75 = vld [vmem:[%s1 + $0xdc] sm:$0xf]
    %v76 = vld [vmem:[%s1 + $0xe0] sm:$0xf]
    %v77 = vld [vmem:[%s1 + $0xe4] sm:$0xf]
    %v78 = vld [vmem:[%s1 + $0xe8] sm:$0xf]
    %v79 = vld [vmem:[%s1 + $0xec] sm:$0xf]
    %v80 = vld [vmem:[%s1 + $0xf0] sm:$0xf]
    %v81 = vld [vmem:[%s1 + $0xf4] sm:$0xf]
    %v82 = vld [vmem:[%s1 + $0xf8] sm:$0xf]
    %v83 = vld [vmem:[%s1 + $0xfc] sm:$0xf]
    %v84 = vld [vmem:[%s1 + $0x100] sm:$0xf]
    %v85 = vld [vmem:[%s1 + $0x104] sm:$0xf]
    %v86 = vld [vmem:[%s1 + $0x108] sm:$0xf]
    %v87 = vld [vmem:[%s1 + $0x10c] sm:$0xf]
    %v88 = vld [vmem:[%s1 + $0x110] sm:$0xf]
    %v89 = vld [vmem:[%s1 + $0x114] sm:$0xf]
    %v90 = vld [vmem:[%s1 + $0x118] sm:$0xf]
    %v91 = vld [vmem:[%s1 + $0x11c] sm:$0xf]
    %v92 = vld [vmem:[%s1 + $0x120] sm:$0xf]
    %v93 = vld [vmem:[%s1 + $0x124] sm:$0xf]
    %v94 = vld [vmem:[%s1 + $0x128] sm:$0xf]
    %v95 = vld [vmem:[%s1 + $0x12c] sm:$0xf]
    %v96 = vld [vmem:[%s1 + $0x130] sm:$0xf]
    %v97 = vld [vmem:[%s1 + $0x134] sm:$0xf]
    %v98 = vld [vmem:[%s1 + $0x138] sm:$0xf]
    %v99 = vld [vmem:[%s1 + $0x13c] sm:$0xf]
    %v100 = vld [vmem:[%s1 + $0x140] sm:$0xf]
    %v101 = vld [vmem:[%s1 + $0x144] sm:$0xf]
    %v102 = vld [vmem:[%s1 + $0x148] sm:$0xf]
    %v103 = vld [vmem:[%s1 + $0x14c] sm:$0xf]
    %v104 = vld [vmem:[%s1 + $0x150] sm:$0xf]
    %v105 = vld [vmem:[%s1 + $0x154] sm:$0xf]
    %v106 = vld [vmem:[%s1 + $0x158] sm:$0xf]
    %v107 = vld [vmem:[%s1 + $0x15c] sm:$0xf]
    %v108 = vld [vmem:[%s1 + $0x160] sm:$0xf]
    %v109 = vld [vmem:[%s1 + $0x164] sm:$0xf]
    %v110 = vld [vmem:[%s1 + $0x168] sm:$0xf]
    %v111 = vld [vmem:[%s1 + $0x16c] sm:$0xf]
    %v112 = vld [vmem:[%s1 + $0x170] sm:$0xf]
    %v113 = vld [vmem:[%s1 + $0x174] sm:$0xf]
    %v114 = vld [vmem:[%s1 + $0x178] sm:$0xf]
    %v115 = vld [vmem:[%s1 + $0x17c] sm:$0xf]
    %v116 = vld [vmem:[%s1 + $0x180] sm:$0xf]
    %v117 = vld [vmem:[%s1 + $0x184] sm:$0xf]
    %v118 = vld [vmem:[%s1 + $0x188] sm:$0xf]
    %v119 = vld [vmem:[%s1 + $0x18c] sm:$0xf]
    %v120 = vld [vmem:[%s1 + $0x190] sm:$0x3]
    %v121 = vld [vmem:[%s2] sm:$0x1]
    %v123 = vlaneseq
    %v124 = vshrl.u32 %v123, 7
    %v125 = vsub.s32 0, %v124
    %v126 = vrot.slane %v121, %v125
    %v132 = vunpack.c.l.b16 %v16
    %v133 = vunpack.c.h.b16 %v16
    %v134 = vunpack.c.l.b16 %v17
    %v135 = vunpack.c.h.b16 %v17
    %v136 = vunpack.c.l.b16 %v18
    %v137 = vunpack.c.h.b16 %v18
    %v138 = vunpack.c.l.b16 %v19
    %v139 = vpack.c.b16 %v132, %v132
    %v140 = vpack.c.b16 %v133, %v133
    %v141 = vpack.c.b16 %v134, %v134
    %v142 = vpack.c.b16 %v135, %v135
    %v143 = vpack.c.b16 %v136, %v136
    %v144 = vpack.c.b16 %v137, %v137
    %v145 = vpack.c.b16 %v138, %v138
    %v253 = vunpack.c.l.b16 %v20
    %v254 = vunpack.c.l.b16 %v21
    %v255 = vunpack.c.l.b16 %v22
    %v256 = vunpack.c.l.b16 %v23
    %v257 = vunpack.c.l.b16 %v24
    %v258 = vunpack.c.l.b16 %v25
    %v259 = vunpack.c.l.b16 %v26
    %v260 = vunpack.c.l.b16 %v27
    %v261 = vunpack.c.l.b16 %v28
    %v262 = vunpack.c.l.b16 %v29
    %v263 = vunpack.c.l.b16 %v30
    %v264 = vunpack.c.l.b16 %v31
    %v265 = vunpack.c.l.b16 %v32
    %v266 = vunpack.c.l.b16 %v33
    %v267 = vunpack.c.l.b16 %v34
    %v268 = vunpack.c.l.b16 %v35
    %v269 = vunpack.c.l.b16 %v36
    %v270 = vunpack.c.l.b16 %v37
    %v271 = vunpack.c.l.b16 %v38
    %v272 = vunpack.c.l.b16 %v39
    %v273 = vunpack.c.l.b16 %v40
    %v274 = vunpack.c.l.b16 %v41
    %v275 = vunpack.c.l.b16 %v42
    %v276 = vunpack.c.l.b16 %v43
    %v277 = vunpack.c.l.b16 %v44
    %v278 = vunpack.c.l.b16 %v45
    %v279 = vunpack.c.l.b16 %v46
    %v280 = vunpack.c.l.b16 %v47
    %v281 = vunpack.c.l.b16 %v48
    %v282 = vunpack.c.l.b16 %v49
    %v283 = vunpack.c.l.b16 %v50
    %v284 = vunpack.c.l.b16 %v51
    %v285 = vunpack.c.l.b16 %v52
    %v286 = vunpack.c.l.b16 %v53
    %v287 = vunpack.c.l.b16 %v54
    %v288 = vunpack.c.l.b16 %v55
    %v289 = vunpack.c.l.b16 %v56
    %v290 = vunpack.c.l.b16 %v57
    %v291 = vunpack.c.l.b16 %v58
    %v292 = vunpack.c.l.b16 %v59
    %v293 = vunpack.c.l.b16 %v60
    %v294 = vunpack.c.l.b16 %v61
    %v295 = vunpack.c.l.b16 %v62
    %v296 = vunpack.c.l.b16 %v63
    %v297 = vunpack.c.l.b16 %v64
    %v298 = vunpack.c.l.b16 %v65
    %v299 = vunpack.c.l.b16 %v66
    %v300 = vunpack.c.l.b16 %v67
    %v301 = vunpack.c.l.b16 %v68
    %v302 = vunpack.c.l.b16 %v69
    %v303 = vunpack.c.l.b16 %v70
    %v304 = vunpack.c.l.b16 %v71
    %v305 = vunpack.c.l.b16 %v72
    %v306 = vunpack.c.l.b16 %v73
    %v307 = vunpack.c.l.b16 %v74
    %v308 = vunpack.c.l.b16 %v75
    %v309 = vunpack.c.l.b16 %v76
    %v310 = vunpack.c.l.b16 %v77
    %v311 = vunpack.c.l.b16 %v78
    %v312 = vunpack.c.l.b16 %v79
    %v313 = vunpack.c.l.b16 %v80
    %v314 = vunpack.c.l.b16 %v81
    %v315 = vunpack.c.l.b16 %v82
    %v316 = vunpack.c.l.b16 %v83
    %v317 = vunpack.c.l.b16 %v84
    %v318 = vunpack.c.l.b16 %v85
    %v319 = vunpack.c.l.b16 %v86
    %v320 = vunpack.c.l.b16 %v87
    %v321 = vunpack.c.l.b16 %v88
    %v322 = vunpack.c.l.b16 %v89
    %v323 = vunpack.c.l.b16 %v90
    %v324 = vunpack.c.l.b16 %v91
    %v325 = vunpack.c.l.b16 %v92
    %v326 = vunpack.c.l.b16 %v93
    %v327 = vunpack.c.l.b16 %v94
    %v328 = vunpack.c.l.b16 %v95
    %v329 = vunpack.c.l.b16 %v96
    %v330 = vunpack.c.l.b16 %v97
    %v331 = vunpack.c.l.b16 %v98
    %v332 = vunpack.c.l.b16 %v99
    %v333 = vunpack.c.l.b16 %v100
    %v334 = vunpack.c.l.b16 %v101
    %v335 = vunpack.c.l.b16 %v102
    %v336 = vunpack.c.l.b16 %v103
    %v337 = vunpack.c.l.b16 %v104
    %v338 = vunpack.c.l.b16 %v105
    %v339 = vunpack.c.l.b16 %v106
    %v340 = vunpack.c.l.b16 %v107
    %v341 = vunpack.c.l.b16 %v108
    %v342 = vunpack.c.l.b16 %v109
    %v343 = vunpack.c.l.b16 %v110
    %v344 = vunpack.c.l.b16 %v111
    %v345 = vunpack.c.l.b16 %v112
    %v346 = vunpack.c.l.b16 %v113
    %v347 = vunpack.c.l.b16 %v114
    %v348 = vunpack.c.l.b16 %v115
    %v349 = vunpack.c.l.b16 %v116
    %v350 = vunpack.c.l.b16 %v117
    %v351 = vunpack.c.l.b16 %v118
    %v352 = vunpack.c.l.b16 %v119
    %v353 = vunpack.c.l.b16 %v120
    %v354 = vpack.c.b16 %v254, %v253
    %v355 = vpack.c.b16 %v256, %v255
    %v356 = vpack.c.b16 %v258, %v257
    %v357 = vpack.c.b16 %v260, %v259
    %v358 = vpack.c.b16 %v262, %v261
    %v359 = vpack.c.b16 %v264, %v263
    %v360 = vpack.c.b16 %v266, %v265
    %v361 = vpack.c.b16 %v268, %v267
    %v362 = vpack.c.b16 %v270, %v269
    %v363 = vpack.c.b16 %v272, %v271
    %v364 = vpack.c.b16 %v274, %v273
    %v365 = vpack.c.b16 %v276, %v275
    %v366 = vpack.c.b16 %v278, %v277
    %v367 = vpack.c.b16 %v280, %v279
    %v368 = vpack.c.b16 %v282, %v281
    %v369 = vpack.c.b16 %v284, %v283
    %v370 = vpack.c.b16 %v286, %v285
    %v371 = vpack.c.b16 %v288, %v287
    %v372 = vpack.c.b16 %v290, %v289
    %v373 = vpack.c.b16 %v292, %v291
    %v374 = vpack.c.b16 %v294, %v293
    %v375 = vpack.c.b16 %v296, %v295
    %v376 = vpack.c.b16 %v298, %v297
    %v377 = vpack.c.b16 %v300, %v299
    %v378 = vpack.c.b16 %v302, %v301
    %v379 = vpack.c.b16 %v304, %v303
    %v380 = vpack.c.b16 %v306, %v305
    %v381 = vpack.c.b16 %v308, %v307
    %v382 = vpack.c.b16 %v310, %v309
    %v383 = vpack.c.b16 %v312, %v311
    %v384 = vpack.c.b16 %v314, %v313
    %v385 = vpack.c.b16 %v316, %v315
    %v386 = vpack.c.b16 %v318, %v317
    %v387 = vpack.c.b16 %v320, %v319
    %v388 = vpack.c.b16 %v322, %v321
    %v389 = vpack.c.b16 %v324, %v323
    %v390 = vpack.c.b16 %v326, %v325
    %v391 = vpack.c.b16 %v328, %v327
    %v392 = vpack.c.b16 %v330, %v329
    %v393 = vpack.c.b16 %v332, %v331
    %v394 = vpack.c.b16 %v334, %v333
    %v395 = vpack.c.b16 %v336, %v335
    %v396 = vpack.c.b16 %v338, %v337
    %v397 = vpack.c.b16 %v340, %v339
    %v398 = vpack.c.b16 %v342, %v341
    %v399 = vpack.c.b16 %v344, %v343
    %v400 = vpack.c.b16 %v346, %v345
    %v401 = vpack.c.b16 %v348, %v347
    %v402 = vpack.c.b16 %v350, %v349
    %v403 = vpack.c.b16 %v352, %v351
    %v404 = vpack.c.b16 %v353, %v353
    %vm455 = vcmask 293888
    %v457 = vsel %vm455, %v145, 0
    %vm459 = vcmask 1041408
    %v461 = vsel %vm459, %v404, 0
    %463 = vmatprep.subr.bf16.mxu0 0
    %464 = vmatpush1.bf16.msra.mxu0 %v354
    %465 = vmatprep.subr.bf16.mxu0 0
    %466 = vmatpush1.bf16.msra.mxu0 %v355
    %467 = vmatprep.subr.bf16.mxu0 0
    %468 = vmatpush1.bf16.msra.mxu0 %v356
    %469 = vmatprep.subr.bf16.mxu0 0
    %470 = vmatpush1.bf16.msra.mxu0 %v357
    %471 = vmatprep.subr.bf16.mxu0 0
    %472 = vmatpush1.bf16.msra.mxu0 %v358
    %473 = vmatprep.subr.bf16.mxu0 0
    %474 = vmatpush1.bf16.msra.mxu0 %v359
    %475 = vmatprep.subr.bf16.mxu0 0
    %476 = vmatpush1.bf16.msra.mxu0 %v360
    %477 = vmatprep.subr.bf16.mxu0 0
    %478 = vmatpush1.bf16.msra.mxu0 %v361
    %479 = vmatprep.subr.bf16.mxu0 0
    %480 = vmatpush1.bf16.msra.mxu0 %v362
    %481 = vmatprep.subr.bf16.mxu0 0
    %482 = vmatpush1.bf16.msra.mxu0 %v363
    %483 = vmatprep.subr.bf16.mxu0 0
    %484 = vmatpush1.bf16.msra.mxu0 %v364
    %485 = vmatprep.subr.bf16.mxu0 0
    %486 = vmatpush1.bf16.msra.mxu0 %v365
    %487 = vmatprep.subr.bf16.mxu0 0
    %488 = vmatpush1.bf16.msra.mxu0 %v366
    %489 = vmatprep.subr.bf16.mxu0 0
    %490 = vmatpush1.bf16.msra.mxu0 %v367
    %491 = vmatprep.subr.bf16.mxu0 0
    %492 = vmatpush1.bf16.msra.mxu0 %v368
    %493 = vmatprep.subr.bf16.mxu0 0
    %494 = vmatpush1.bf16.msra.mxu0 %v369
    %495 = vmatprep.mubr.bf16.mxu0 %v140
    %496 = vmatmul.mubr.bf16.gmra.mrb[0].mxu0 %v139
    %v497 = vpop.f32.mrb[0].mxu0
    %v498 = vadd.f32 %v126, %v497
    %v499 = vpop.f32.mrb[0].mxu0
    %v500 = vpop.f32.mrb[0].mxu0
    %v501 = vpop.f32.mrb[0].mxu0
    %502 = vdwg.mxu0
    %503 = vmatprep.subr.bf16.mxu0 0
    %504 = vmatpush1.bf16.msra.mxu0 %v370
    %505 = vmatprep.subr.bf16.mxu0 0
    %506 = vmatpush1.bf16.msra.mxu0 %v371
    %507 = vmatprep.subr.bf16.mxu0 0
    %508 = vmatpush1.bf16.msra.mxu0 %v372
    %509 = vmatprep.subr.bf16.mxu0 0
    %510 = vmatpush1.bf16.msra.mxu0 %v373
    %511 = vmatprep.subr.bf16.mxu0 0
    %512 = vmatpush1.bf16.msra.mxu0 %v374
    %513 = vmatprep.subr.bf16.mxu0 0
    %514 = vmatpush1.bf16.msra.mxu0 %v375
    %515 = vmatprep.subr.bf16.mxu0 0
    %516 = vmatpush1.bf16.msra.mxu0 %v376
    %517 = vmatprep.subr.bf16.mxu0 0
    %518 = vmatpush1.bf16.msra.mxu0 %v377
    %519 = vmatprep.subr.bf16.mxu0 0
    %520 = vmatpush1.bf16.msra.mxu0 %v378
    %521 = vmatprep.subr.bf16.mxu0 0
    %522 = vmatpush1.bf16.msra.mxu0 %v379
    %523 = vmatprep.subr.bf16.mxu0 0
    %524 = vmatpush1.bf16.msra.mxu0 %v380
    %525 = vmatprep.subr.bf16.mxu0 0
    %526 = vmatpush1.bf16.msra.mxu0 %v381
    %527 = vmatprep.subr.bf16.mxu0 0
    %528 = vmatpush1.bf16.msra.mxu0 %v382
    %529 = vmatprep.subr.bf16.mxu0 0
    %530 = vmatpush1.bf16.msra.mxu0 %v383
    %531 = vmatprep.subr.bf16.mxu0 0
    %532 = vmatpush1.bf16.msra.mxu0 %v384
    %533 = vmatprep.subr.bf16.mxu0 0
    %534 = vmatpush1.bf16.msra.mxu0 %v385
    %535 = vmatprep.mubr.bf16.mxu0 %v142
    %536 = vmatmul.mubr.bf16.gmra.mrb[0].mxu0 %v141
    %v537 = vpop.f32.mrb[0].mxu0
    %v538 = vadd.f32 %v498, %v537
    %v539 = vpop.f32.mrb[0].mxu0
    %v540 = vpop.f32.mrb[0].mxu0
    %v541 = vpop.f32.mrb[0].mxu0
    %542 = vdwg.mxu0
    %543 = vmatprep.subr.bf16.mxu0 0
    %544 = vmatpush1.bf16.msra.mxu0 %v386
    %545 = vmatprep.subr.bf16.mxu0 0
    %546 = vmatpush1.bf16.msra.mxu0 %v387
    %547 = vmatprep.subr.bf16.mxu0 0
    %548 = vmatpush1.bf16.msra.mxu0 %v388
    %549 = vmatprep.subr.bf16.mxu0 0
    %550 = vmatpush1.bf16.msra.mxu0 %v389
    %551 = vmatprep.subr.bf16.mxu0 0
    %552 = vmatpush1.bf16.msra.mxu0 %v390
    %553 = vmatprep.subr.bf16.mxu0 0
    %554 = vmatpush1.bf16.msra.mxu0 %v391
    %555 = vmatprep.subr.bf16.mxu0 0
    %556 = vmatpush1.bf16.msra.mxu0 %v392
    %557 = vmatprep.subr.bf16.mxu0 0
    %558 = vmatpush1.bf16.msra.mxu0 %v393
    %559 = vmatprep.subr.bf16.mxu0 0
    %560 = vmatpush1.bf16.msra.mxu0 %v394
    %561 = vmatprep.subr.bf16.mxu0 0
    %562 = vmatpush1.bf16.msra.mxu0 %v395
    %563 = vmatprep.subr.bf16.mxu0 0
    %564 = vmatpush1.bf16.msra.mxu0 %v396
    %565 = vmatprep.subr.bf16.mxu0 0
    %566 = vmatpush1.bf16.msra.mxu0 %v397
    %567 = vmatprep.subr.bf16.mxu0 0
    %568 = vmatpush1.bf16.msra.mxu0 %v398
    %569 = vmatprep.subr.bf16.mxu0 0
    %570 = vmatpush1.bf16.msra.mxu0 %v399
    %571 = vmatprep.subr.bf16.mxu0 0
    %572 = vmatpush1.bf16.msra.mxu0 %v400
    %573 = vmatprep.subr.bf16.mxu0 0
    %574 = vmatpush1.bf16.msra.mxu0 %v401
    %575 = vmatprep.mubr.bf16.mxu0 %v144
    %576 = vmatmul.mubr.bf16.gmra.mrb[0].mxu0 %v143
    %v577 = vpop.f32.mrb[0].mxu0
    %v578 = vadd.f32 %v538, %v577
    %v579 = vpop.f32.mrb[0].mxu0
    %v580 = vpop.f32.mrb[0].mxu0
    %v581 = vpop.f32.mrb[0].mxu0
    %582 = vdwg.mxu0
    %583 = vmatprep.subr.bf16.mxu0 0
    %584 = vmatpush1.bf16.msra.mxu0 %v402
    %585 = vmatprep.subr.bf16.mxu0 0
    %586 = vmatpush1.bf16.msra.mxu0 %v403
    %587 = vmatprep.subr.bf16.mxu0 0
    %588 = vmatpush1.bf16.msra.mxu0 %v461
    %589 = vmatprep.subr.bf16.mxu0 0
    %590 = vmatpush1.bf16.msra.mxu0 0
    %591 = vmatprep.subr.bf16.mxu0 0
    %592 = vmatpush1.bf16.msra.mxu0 0
    %593 = vmatprep.subr.bf16.mxu0 0
    %594 = vmatpush1.bf16.msra.mxu0 0
    %595 = vmatprep.subr.bf16.mxu0 0
    %596 = vmatpush1.bf16.msra.mxu0 0
    %597 = vmatprep.subr.bf16.mxu0 0
    %598 = vmatpush1.bf16.msra.mxu0 0
    %599 = vmatprep.subr.bf16.mxu0 0
    %600 = vmatpush1.bf16.msra.mxu0 0
    %601 = vmatprep.subr.bf16.mxu0 0
    %602 = vmatpush1.bf16.msra.mxu0 0
    %603 = vmatprep.subr.bf16.mxu0 0
    %604 = vmatpush1.bf16.msra.mxu0 0
    %605 = vmatprep.subr.bf16.mxu0 0
    %606 = vmatpush1.bf16.msra.mxu0 0
    %607 = vmatprep.subr.bf16.mxu0 0
    %608 = vmatpush1.bf16.msra.mxu0 0
    %609 = vmatprep.subr.bf16.mxu0 0
    %610 = vmatpush1.bf16.msra.mxu0 0
    %611 = vmatprep.subr.bf16.mxu0 0
    %612 = vmatpush1.bf16.msra.mxu0 0
    %613 = vmatprep.subr.bf16.mxu0 0
    %614 = vmatpush1.bf16.msra.mxu0 0
    %615 = vmatprep.mubr.bf16.mxu0 0
    %616 = vmatmul.mubr.bf16.gmra.mrb[0].mxu0 %v457
    %v617 = vpop.f32.mrb[0].mxu0
    %v618 = vadd.f32 %v578, %v617
    %v619 = vpop.f32.mrb[0].mxu0
    %v620 = vpop.f32.mrb[0].mxu0
    %v621 = vpop.f32.mrb[0].mxu0
    %622 = vdwg.mxu0
    %vm623 = vcmask 523264
    %624 = vst.msk [vmem:[#allocation2] sm:$0xff] %vm623, %v618
    // Predicated region
    $region14: #{image_encoder.5} parent=1 // pred_check
      _
    $region15: #{image_encoder.5} parent=1 // pred_check_branch
      %626 = sbr.rel (0) target = $region17
    $region16: #{image_encoder.5} parent=1 // pred_region
      %s628 = ssub.s32 128, 128
      %629 = vsyncadd [#allocation3], %s628
      %s631 = sshll.u32 [#allocation2], 4
      %s632 = int_to_ptr.vmem [resolvable:$true] %s631
      %634 = dma.vmem_to_hbm [thread:$0]  %s632, 128, %s3, [#allocation3]
    $region17: #{image_encoder.5} parent=1 // pred_fallthru
      _
    // Predicated region
    $region18: #{image_encoder.5} parent=1 // pred_check
      _
    $region19: #{image_encoder.5} parent=1 // pred_check_branch
      %636 = sbr.rel (0) target = $region21
    $region20: #{image_encoder.5} parent=1 // pred_region
      %637 = dma.done [#allocation3], 128
    $region21: #{image_encoder.5} parent=1 // pred_fallthru
      _
    %638 = vsyncpa [#allocation3], 1

</llo_original>
